<compile_context>
chip_gen: v5e
topology: v5e:2x2
jax: 0.10.0
libtpu: 0.0.40
codegen_flags: <defaults>
</compile_context>

<pallas_src>
import functools
import math

import jax
import jax.numpy as jnp
from jax import lax
from jax.experimental import pallas as pl
from jax.experimental.pallas import tpu as pltpu


def attention_block_kernel(x_ref, gmap_ref, gmapT_ref, wqv_ref, bqv_ref,
                           wkT_ref, bk_ref, wproj_ref, bproj_ref,
                           o_ref, attn_scr, *, num_groups, num_heads):
    x = x_ref[0].astype(jnp.float32)                 # (C, T)
    C, T = x.shape
    cpg = C // num_groups
    eps = 1e-5

    # ---- GroupNorm stats on the native (C, T) layout ----
    # Lane (T) reductions first -> tiny (C,1) vectors; the group reduce runs on
    # those via small indicator matmuls, so the full (C,T) tensor is never
    # re-tiled to a (G, cpg, T) view.
    s1 = jnp.sum(x, axis=1, keepdims=True)           # (C, 1)
    s2 = jnp.sum(x * x, axis=1, keepdims=True)       # (C, 1)
    if cpg == 1:
        inv_n = 1.0 / float(T)
        mean_c = s1 * inv_n
        inv_c = lax.rsqrt(s2 * inv_n - mean_c * mean_c + eps)
    else:
        # gmap rows already carry 1/(cpg*T); gmapT broadcasts group stats back.
        mean_g = jnp.dot(gmap_ref[...], s1, preferred_element_type=jnp.float32)      # (G, 1)
        ex2_g = jnp.dot(gmap_ref[...], s2, preferred_element_type=jnp.float32)       # (G, 1)
        inv_g = lax.rsqrt(ex2_g - mean_g * mean_g + eps)                             # (G, 1)
        mean_c = jnp.dot(gmapT_ref[...], mean_g, preferred_element_type=jnp.float32) # (C, 1)
        inv_c = jnp.dot(gmapT_ref[...], inv_g, preferred_element_type=jnp.float32)   # (C, 1)
    # TODO(synk): one-pass E[x^2]-E[x]^2 can cancel for large-mean activations;
    # switch to a two-pass variance if production data requires it.
    xn = (x - mean_c) * inv_c                        # (C, T); affine folded into weights
    xn_bf = xn.astype(jnp.bfloat16)

    # ---- qkv projection (gamma/beta + attention scale folded in wrapper) ----
    # Q and V channels-first: canonical (2C,C)@(C,T) GEMM, bf16 operands, f32 accum.
    qv = jnp.dot(wqv_ref[...], xn_bf,
                 preferred_element_type=jnp.float32) + bqv_ref[...]                  # (2C, T)
    # K produced once transposed: (T, C) = xn^T @ Wk^T (f32 operands; see header).
    k_t = lax.dot_general(xn, wkT_ref[...], (((0,), (0,)), ((), ())),
                          preferred_element_type=jnp.float32) + bk_ref[...]          # (T, C)
    # Hoisted bf16 casts: cast once, slice the bf16 buffers per head.
    qv_bf = qv.astype(jnp.bfloat16)
    k_t_bf = k_t.astype(jnp.bfloat16)

    # ---- multi-head attention, channels-first output ----
    ch = C // num_heads
    for h in range(num_heads):
        kh_t = k_t_bf[:, h * ch:(h + 1) * ch]        # (T, ch)
        qh = qv_bf[h * ch:(h + 1) * ch, :]           # (ch, T)
        vh = qv_bf[C + h * ch:C + (h + 1) * ch, :]   # (ch, T)
        # scores^T[s, t] = sum_c k[c, s] * q[c, t]   -> (T, ch) @ (ch, T)
        sT = jnp.dot(kh_t, qh, preferred_element_type=jnp.float32)                   # (T, T)
        sT = sT - jnp.max(sT, axis=0, keepdims=True)       # softmax over s (sublane axis)
        e = jnp.exp(sT)
        denom = jnp.sum(e, axis=0, keepdims=True)                                    # (1, T)
        # out[c, t] = sum_s v[c, s] * e[s, t] / denom[t]
        # Short-LHS PV matmul (ch rows) against the dense (T,T) RHS; softmax
        # normalization deferred past the matmul (a (ch,T) multiply, not (T,T)).
        o_h = jnp.dot(vh, e.astype(jnp.bfloat16),
                      preferred_element_type=jnp.float32)                            # (ch, T)
        attn_scr[h * ch:(h + 1) * ch, :] = o_h * pl.reciprocal(denom, approx=True)
    # TODO(synk): flash-style online-softmax over KV tiles for large T
    # (generation-aware threshold; see header).

    # ---- proj_out (1x1 conv) + residual: canonical (C,C)@(C,T), bf16 operands ----
    hproj = jnp.dot(wproj_ref[...], attn_scr[...].astype(jnp.bfloat16),
                    preferred_element_type=jnp.float32) + bproj_ref[...]             # (C, T)
    o_ref[0] = (x + hproj).astype(o_ref.dtype)


def attention_block(x, params, num_heads=1):
    gamma, beta, wqkv, bqkv, wproj, bproj = params
    B, C = x.shape[:2]
    spatial = x.shape[2:]
    T = 1
    for s in spatial:
        T *= int(s)
    G = min(C, 32)
    if C % G != 0:
        raise ValueError(f"channels={C} not divisible by num_groups={G}")
    if C % num_heads != 0:
        raise ValueError(f"channels={C} not divisible by num_heads={num_heads}")
    cpg = C // G
    ch = C // num_heads
    scale = 1.0 / math.sqrt(math.sqrt(ch))

    f32 = jnp.float32
    gamma = gamma.astype(f32)
    beta = beta.astype(f32)
    wqkv = wqkv.astype(f32)
    bqkv = bqkv.astype(f32)
    wproj_f = wproj.astype(f32)
    bproj_f = bproj.astype(f32)

    # Fold GroupNorm affine into the qkv conv:  W@(g*xn+b)+bq = (W*g)@xn + (W@b+bq)
    w_eff = wqkv * gamma[None, :]                            # (3C, C)
    b_eff = wqkv @ beta + bqkv                               # (3C,)
    # Legacy interleaved per-head [q|k|v] ordering (matches qkv.reshape(B*H, 3*ch, T)).
    w3 = w_eff.reshape(num_heads, 3, ch, C)
    b3 = b_eff.reshape(num_heads, 3, ch)
    wq = (w3[:, 0] * scale).reshape(C, C)
    wk = (w3[:, 1] * scale).reshape(C, C)
    wv = w3[:, 2].reshape(C, C)
    bq = (b3[:, 0] * scale).reshape(C)
    bk = (b3[:, 1] * scale).reshape(C)
    bv = b3[:, 2].reshape(C)
    wqv = jnp.concatenate([wq, wv], axis=0).astype(jnp.bfloat16)   # (2C, C) channels-first Q|V
    bqv = jnp.concatenate([bq, bv]).reshape(2 * C, 1)              # (2C, 1) f32
    wk_t = wk.T                                                    # (C, C) f32 (K projected transposed)
    bk_row = bk.reshape(1, C)                                      # (1, C) f32
    wproj_bf = wproj_f.astype(jnp.bfloat16)
    bproj_col = bproj_f.reshape(C, 1)

    # Group indicator maps for the GroupNorm group reduction (1/(cpg*T) folded into gmap).
    ch_group = jnp.arange(C, dtype=jnp.int32) // cpg
    g_ids = jnp.arange(G, dtype=jnp.int32)
    gmap = (g_ids[:, None] == ch_group[None, :]).astype(f32) * (1.0 / float(cpg * T))  # (G, C)
    gmapT = (ch_group[:, None] == g_ids[None, :]).astype(f32)                           # (C, G)

    # Generation-aware VMEM budget: v5e/v6e (128 MiB physical) -> ~96 MiB,
    # v7x (64 MiB physical) -> 48 MiB.
    try:
        vmem_cap = int(pltpu.get_tpu_info().vmem_capacity_bytes)
    except Exception:
        vmem_cap = 64 * 1024 * 1024
    vmem_limit = int(min(100 * 1024 * 1024, (vmem_cap * 3) // 4))

    x3 = x.reshape(B, C, T)
    kernel = functools.partial(attention_block_kernel,
                               num_groups=G, num_heads=num_heads)

    # TODO(synk): add a second "parallel" grid axis (query tile or head split)
    # when B is 1/odd so both v7x TensorCores get work; grid=(B,) is fine here.
    out = pl.pallas_call(
        kernel,
        out_shape=jax.ShapeDtypeStruct((B, C, T), x.dtype),
        grid_spec=pltpu.PrefetchScalarGridSpec(
            num_scalar_prefetch=0,
            grid=(B,),
            in_specs=[
                pl.BlockSpec((1, C, T), lambda b: (b, 0, 0)),        # x
                pl.BlockSpec((G, C), lambda b: (0, 0)),              # group indicator (1/(cpg*T) folded)
                pl.BlockSpec((C, G), lambda b: (0, 0)),              # group broadcast-back indicator
                pl.BlockSpec((2 * C, C), lambda b: (0, 0)),          # [W_q; W_v] channels-first (bf16)
                pl.BlockSpec((2 * C, 1), lambda b: (0, 0)),          # [b_q; b_v]
                pl.BlockSpec((C, C), lambda b: (0, 0)),              # W_k^T (f32)
                pl.BlockSpec((1, C), lambda b: (0, 0)),              # b_k
                pl.BlockSpec((C, C), lambda b: (0, 0)),              # W_proj (bf16)
                pl.BlockSpec((C, 1), lambda b: (0, 0)),              # b_proj
            ],
            out_specs=pl.BlockSpec((1, C, T), lambda b: (b, 0, 0)),
            scratch_shapes=[pltpu.VMEM((C, T), jnp.float32)],        # channels-first attention accumulator
        ),
        compiler_params=pltpu.CompilerParams(
            dimension_semantics=("parallel",),
            vmem_limit_bytes=vmem_limit,
        ),
    )(x3, gmap, gmapT, wqv, bqv, wk_t, bk_row, wproj_bf, bproj_col)
    return out.reshape(B, C, *spatial)


def attention_block_reference(x, params, num_heads=1):
    """Pure-JAX f32 reference mirroring the PyTorch forward (sanity check)."""
    gamma, beta, wqkv, bqkv, wproj, bproj = params
    B, C = x.shape[:2]
    spatial = x.shape[2:]
    T = 1
    for s in spatial:
        T *= int(s)
    xf = x.reshape(B, C, T).astype(jnp.float32)
    G = min(C, 32)
    cpg = C // G
    xg = xf.reshape(B, G, cpg * T)
    mean = xg.mean(-1, keepdims=True)
    var = ((xg - mean) ** 2).mean(-1, keepdims=True)
    xn = ((xg - mean) / jnp.sqrt(var + 1e-5)).reshape(B, C, T)
    xn = xn * gamma[None, :, None] + beta[None, :, None]
    qkv = jnp.einsum('oc,bct->bot', wqkv, xn) + bqkv[None, :, None]
    qkv = qkv.reshape(B * num_heads, -1, T)
    ch = qkv.shape[1] // 3
    q, k, v = jnp.split(qkv, 3, axis=1)
    scale = 1.0 / math.sqrt(math.sqrt(ch))
    w = jnp.einsum('bct,bcs->bts', q * scale, k * scale)
    w = jax.nn.softmax(w.astype(jnp.float32), axis=-1)
    h = jnp.einsum('bts,bcs->bct', w, v).reshape(B, C, T)
    h = jnp.einsum('oc,bct->bot', wproj, h) + bproj[None, :, None]
    return (xf + h).reshape(x.shape)


if __name__ == "__main__":
    def run_case(B, C, HH, WW, num_heads, key):
        kx, kw, kb, kg, kbe, kpw, kpb = jax.random.split(key, 7)
        x = jax.random.normal(kx, (B, C, HH, WW), dtype=jnp.float32)
        gamma = 1.0 + 0.1 * jax.random.normal(kg, (C,), jnp.float32)
        beta = 0.1 * jax.random.normal(kbe, (C,), jnp.float32)
        wqkv = 0.1 * jax.random.normal(kw, (3 * C, C), jnp.float32)
        bqkv = 0.1 * jax.random.normal(kb, (3 * C,), jnp.float32)
        # AttentionBlock zero-inits proj_out; use non-zero weights so the test
        # actually exercises the attention + projection path.
        wproj = 0.1 * jax.random.normal(kpw, (C, C), jnp.float32)
        bproj = 0.1 * jax.random.normal(kpb, (C,), jnp.float32)
        params = (gamma, beta, wqkv, bqkv, wproj, bproj)

        out = jax.block_until_ready(attention_block(x, params, num_heads=num_heads))
        ref = attention_block_reference(x, params, num_heads=num_heads)
        assert out.shape == x.shape and out.dtype == x.dtype
        max_err = float(jnp.max(jnp.abs(out - ref)))
        assert jnp.allclose(out, ref, atol=3e-2, rtol=3e-2), f"max err {max_err}"

    key = jax.random.PRNGKey(0)
    k1, k2 = jax.random.split(key)
    run_case(2, 4, 16, 16, 1, k1)       # spec-sized demo: single head, cpg=1 path
    run_case(2, 64, 16, 16, 4, k2)      # multi-head, cpg=2, exercises group-matmul + scratch paths
    print("KERNEL_OK")
</pallas_src>

<mosaic_0001>
module attributes {stable_mosaic.version = 11 : i64} {
  func.func @attention_block_kernel(%arg0: i32, %arg1: memref<1x4x256xf32, #tpu.memory_space<vmem>>, %arg2: memref<4x4xf32, #tpu.memory_space<vmem>>, %arg3: memref<4x4xf32, #tpu.memory_space<vmem>>, %arg4: memref<8x4xbf16, #tpu.memory_space<vmem>>, %arg5: memref<8x1xf32, #tpu.memory_space<vmem>>, %arg6: memref<4x4xf32, #tpu.memory_space<vmem>>, %arg7: memref<1x4xf32, #tpu.memory_space<vmem>>, %arg8: memref<4x4xbf16, #tpu.memory_space<vmem>>, %arg9: memref<4x1xf32, #tpu.memory_space<vmem>>, %arg10: memref<1x4x256xf32, #tpu.memory_space<vmem>>, %arg11: memref<4x256xf32, #tpu.memory_space<vmem>>) attributes {dimension_semantics = [#tpu.dimension_semantics<parallel>], iteration_bounds = array<i64: 2>, scalar_prefetch = 0 : i64, scratch_operands = 1 : i64, tpu.core_type = #tpu.core_type<tc>, window_params = [{transform_indices = @transform_0, window_bounds = array<i64: 1, 4, 256>}, {pipeline_mode = #tpu.pipeline_mode<synchronous>, transform_indices = @transform_1, window_bounds = array<i64: 4, 4>}, {pipeline_mode = #tpu.pipeline_mode<synchronous>, transform_indices = @transform_2, window_bounds = array<i64: 4, 4>}, {pipeline_mode = #tpu.pipeline_mode<synchronous>, transform_indices = @transform_3, window_bounds = array<i64: 8, 4>}, {pipeline_mode = #tpu.pipeline_mode<synchronous>, transform_indices = @transform_4, window_bounds = array<i64: 8, 1>}, {pipeline_mode = #tpu.pipeline_mode<synchronous>, transform_indices = @transform_5, window_bounds = array<i64: 4, 4>}, {pipeline_mode = #tpu.pipeline_mode<synchronous>, transform_indices = @transform_6, window_bounds = array<i64: 1, 4>}, {pipeline_mode = #tpu.pipeline_mode<synchronous>, transform_indices = @transform_7, window_bounds = array<i64: 4, 4>}, {pipeline_mode = #tpu.pipeline_mode<synchronous>, transform_indices = @transform_8, window_bounds = array<i64: 4, 1>}, {transform_indices = @transform_9, window_bounds = array<i64: 1, 4, 256>}]} {
    %c0 = arith.constant 0 : index
    %c0_0 = arith.constant 0 : index
    %c0_1 = arith.constant 0 : index
    %0 = vector.load %arg1[%c0, %c0_0, %c0_1] : memref<1x4x256xf32, #tpu.memory_space<vmem>>, vector<1x4x256xf32>
    %1 = vector.shape_cast %0 : vector<1x4x256xf32> to vector<4x256xf32>
    %cst = arith.constant dense<0.000000e+00> : vector<4xf32>
    %2 = vector.multi_reduction <add>, %1, %cst [1] : vector<4x256xf32> to vector<4xf32>
    %3 = vector.shape_cast %2 : vector<4xf32> to vector<4x1xf32>
    %4 = arith.mulf %1, %1 : vector<4x256xf32>
    %cst_2 = arith.constant dense<0.000000e+00> : vector<4xf32>
    %5 = vector.multi_reduction <add>, %4, %cst_2 [1] : vector<4x256xf32> to vector<4xf32>
    %6 = vector.shape_cast %5 : vector<4xf32> to vector<4x1xf32>
    %cst_3 = arith.constant 3.906250e-03 : f32
    %7 = vector.broadcast %cst_3 : f32 to vector<4x1xf32>
    %8 = arith.mulf %3, %7 : vector<4x1xf32>
    %cst_4 = arith.constant 3.906250e-03 : f32
    %9 = vector.broadcast %cst_4 : f32 to vector<4x1xf32>
    %10 = arith.mulf %6, %9 : vector<4x1xf32>
    %11 = arith.mulf %8, %8 : vector<4x1xf32>
    %12 = arith.subf %10, %11 : vector<4x1xf32>
    %cst_5 = arith.constant 9.99999974E-6 : f32
    %13 = vector.broadcast %cst_5 : f32 to vector<4x1xf32>
    %14 = arith.addf %12, %13 : vector<4x1xf32>
    %15 = math.rsqrt %14 : vector<4x1xf32>
    %16 = vector.broadcast %8 : vector<4x1xf32> to vector<4x256xf32>
    %17 = arith.subf %1, %16 : vector<4x256xf32>
    %18 = vector.broadcast %15 : vector<4x1xf32> to vector<4x256xf32>
    %19 = arith.mulf %17, %18 : vector<4x256xf32>
    %20 = arith.truncf %19 : vector<4x256xf32> to vector<4x256xbf16>
    %c0_6 = arith.constant 0 : index
    %c0_7 = arith.constant 0 : index
    %21 = vector.load %arg4[%c0_6, %c0_7] : memref<8x4xbf16, #tpu.memory_space<vmem>>, vector<8x4xbf16>
    %cst_8 = arith.constant dense<0.000000e+00> : vector<8x256xf32>
    %22 = tpu.matmul %21, %20, %cst_8 {dimension_numbers = #tpu.dot_dimension_numbers<[1], [0], [0], [1], [0, 0, 1, 1], [], []>} : vector<8x4xbf16>, vector<4x256xbf16>, vector<8x256xf32> -> vector<8x256xf32>
    %c0_9 = arith.constant 0 : index
    %c0_10 = arith.constant 0 : index
    %23 = vector.load %arg5[%c0_9, %c0_10] : memref<8x1xf32, #tpu.memory_space<vmem>>, vector<8x1xf32>
    %24 = vector.broadcast %23 : vector<8x1xf32> to vector<8x256xf32>
    %25 = arith.addf %22, %24 : vector<8x256xf32>
    %c0_11 = arith.constant 0 : index
    %c0_12 = arith.constant 0 : index
    %26 = vector.load %arg6[%c0_11, %c0_12] : memref<4x4xf32, #tpu.memory_space<vmem>>, vector<4x4xf32>
    %cst_13 = arith.constant dense<0.000000e+00> : vector<256x4xf32>
    %27 = tpu.matmul %19, %26, %cst_13 {dimension_numbers = #tpu.dot_dimension_numbers<[0], [0], [1], [1], [0, 1, 1, 1], [], []>} : vector<4x256xf32>, vector<4x4xf32>, vector<256x4xf32> -> vector<256x4xf32>
    %c0_14 = arith.constant 0 : index
    %c0_15 = arith.constant 0 : index
    %28 = vector.load %arg7[%c0_14, %c0_15] : memref<1x4xf32, #tpu.memory_space<vmem>>, vector<1x4xf32>
    %29 = vector.broadcast %28 : vector<1x4xf32> to vector<256x4xf32>
    %30 = arith.addf %27, %29 : vector<256x4xf32>
    %31 = arith.truncf %25 : vector<8x256xf32> to vector<8x256xbf16>
    %32 = arith.truncf %30 : vector<256x4xf32> to vector<256x4xbf16>
    %33 = vector.extract_strided_slice %31 {offsets = [0, 0], sizes = [4, 256], strides = [1, 1]} : vector<8x256xbf16> to vector<4x256xbf16>
    %34 = vector.extract_strided_slice %31 {offsets = [4, 0], sizes = [4, 256], strides = [1, 1]} : vector<8x256xbf16> to vector<4x256xbf16>
    %cst_16 = arith.constant dense<0.000000e+00> : vector<256x256xf32>
    %35 = tpu.matmul %32, %33, %cst_16 {dimension_numbers = #tpu.dot_dimension_numbers<[1], [0], [0], [1], [0, 0, 1, 1], [], []>} : vector<256x4xbf16>, vector<4x256xbf16>, vector<256x256xf32> -> vector<256x256xf32>
    %cst_17 = arith.constant dense<0xFF800000> : vector<256xf32>
    %36 = vector.multi_reduction <maximumf>, %35, %cst_17 [0] : vector<256x256xf32> to vector<256xf32>
    %37 = vector.shape_cast %36 : vector<256xf32> to vector<1x256xf32>
    %38 = vector.broadcast %37 : vector<1x256xf32> to vector<256x256xf32>
    %39 = arith.subf %35, %38 : vector<256x256xf32>
    %40 = math.exp %39 : vector<256x256xf32>
    %cst_18 = arith.constant dense<0.000000e+00> : vector<256xf32>
    %41 = vector.multi_reduction <add>, %40, %cst_18 [0] : vector<256x256xf32> to vector<256xf32>
    %42 = vector.shape_cast %41 : vector<256xf32> to vector<1x256xf32>
    %43 = arith.truncf %40 : vector<256x256xf32> to vector<256x256xbf16>
    %cst_19 = arith.constant dense<0.000000e+00> : vector<4x256xf32>
    %44 = tpu.matmul %34, %43, %cst_19 {dimension_numbers = #tpu.dot_dimension_numbers<[1], [0], [0], [1], [0, 0, 1, 1], [], []>} : vector<4x256xbf16>, vector<256x256xbf16>, vector<4x256xf32> -> vector<4x256xf32>
    %45 = tpu.reciprocal %42 {approx = true} : vector<1x256xf32> -> vector<1x256xf32>
    %46 = vector.broadcast %45 : vector<1x256xf32> to vector<4x256xf32>
    %47 = arith.mulf %44, %46 : vector<4x256xf32>
    %c0_20 = arith.constant 0 : index
    %c0_21 = arith.constant 0 : index
    %48 = vector.load %arg11[%c0_20, %c0_21] : memref<4x256xf32, #tpu.memory_space<vmem>>, vector<4x256xf32>
    tpu.vector_store %arg11[%c0_20, %c0_21], %47 {strides = array<i32>} : memref<4x256xf32, #tpu.memory_space<vmem>>, vector<4x256xf32>,
    %c0_22 = arith.constant 0 : index
    %c0_23 = arith.constant 0 : index
    %49 = vector.load %arg8[%c0_22, %c0_23] : memref<4x4xbf16, #tpu.memory_space<vmem>>, vector<4x4xbf16>
    %c0_24 = arith.constant 0 : index
    %c0_25 = arith.constant 0 : index
    %50 = vector.load %arg11[%c0_24, %c0_25] : memref<4x256xf32, #tpu.memory_space<vmem>>, vector<4x256xf32>
    %51 = arith.truncf %50 : vector<4x256xf32> to vector<4x256xbf16>
    %cst_26 = arith.constant dense<0.000000e+00> : vector<4x256xf32>
    %52 = tpu.matmul %49, %51, %cst_26 {dimension_numbers = #tpu.dot_dimension_numbers<[1], [0], [0], [1], [0, 0, 1, 1], [], []>} : vector<4x4xbf16>, vector<4x256xbf16>, vector<4x256xf32> -> vector<4x256xf32>
    %c0_27 = arith.constant 0 : index
    %c0_28 = arith.constant 0 : index
    %53 = vector.load %arg9[%c0_27, %c0_28] : memref<4x1xf32, #tpu.memory_space<vmem>>, vector<4x1xf32>
    %54 = vector.broadcast %53 : vector<4x1xf32> to vector<4x256xf32>
    %55 = arith.addf %52, %54 : vector<4x256xf32>
    %56 = arith.addf %1, %55 : vector<4x256xf32>
    %c0_29 = arith.constant 0 : index
    %c0_30 = arith.constant 0 : index
    %c0_31 = arith.constant 0 : index
    %57 = vector.load %arg10[%c0_29, %c0_30, %c0_31] : memref<1x4x256xf32, #tpu.memory_space<vmem>>, vector<1x4x256xf32>
    %58 = vector.shape_cast %57 : vector<1x4x256xf32> to vector<4x256xf32>
    %59 = vector.shape_cast %56 : vector<4x256xf32> to vector<1x4x256xf32>
    tpu.vector_store %arg10[%c0_29, %c0_30, %c0_31], %59 {strides = array<i32>} : memref<1x4x256xf32, #tpu.memory_space<vmem>>, vector<1x4x256xf32>,
    return
  }
  func.func @transform_0(%arg0: i32) -> (i32, i32, i32) {
    %c0_i32 = arith.constant 0 : i32
    %c0_i32_0 = arith.constant 0 : i32
    %c0_i32_1 = arith.constant 0 : i32
    return %arg0, %c0_i32, %c0_i32_0 : i32, i32, i32
  }
  func.func @transform_1(%arg0: i32) -> (i32, i32) {
    %c0_i32 = arith.constant 0 : i32
    %c0_i32_0 = arith.constant 0 : i32
    %c0_i32_1 = arith.constant 0 : i32
    return %c0_i32, %c0_i32_0 : i32, i32
  }
  func.func @transform_2(%arg0: i32) -> (i32, i32) {
    %c0_i32 = arith.constant 0 : i32
    %c0_i32_0 = arith.constant 0 : i32
    %c0_i32_1 = arith.constant 0 : i32
    return %c0_i32, %c0_i32_0 : i32, i32
  }
  func.func @transform_3(%arg0: i32) -> (i32, i32) {
    %c0_i32 = arith.constant 0 : i32
    %c0_i32_0 = arith.constant 0 : i32
    %c0_i32_1 = arith.constant 0 : i32
    return %c0_i32, %c0_i32_0 : i32, i32
  }
  func.func @transform_4(%arg0: i32) -> (i32, i32) {
    %c0_i32 = arith.constant 0 : i32
    %c0_i32_0 = arith.constant 0 : i32
    %c0_i32_1 = arith.constant 0 : i32
    return %c0_i32, %c0_i32_0 : i32, i32
  }
  func.func @transform_5(%arg0: i32) -> (i32, i32) {
    %c0_i32 = arith.constant 0 : i32
    %c0_i32_0 = arith.constant 0 : i32
    %c0_i32_1 = arith.constant 0 : i32
    return %c0_i32, %c0_i32_0 : i32, i32
  }
  func.func @transform_6(%arg0: i32) -> (i32, i32) {
    %c0_i32 = arith.constant 0 : i32
    %c0_i32_0 = arith.constant 0 : i32
    %c0_i32_1 = arith.constant 0 : i32
    return %c0_i32, %c0_i32_0 : i32, i32
  }
  func.func @transform_7(%arg0: i32) -> (i32, i32) {
    %c0_i32 = arith.constant 0 : i32
    %c0_i32_0 = arith.constant 0 : i32
    %c0_i32_1 = arith.constant 0 : i32
    return %c0_i32, %c0_i32_0 : i32, i32
  }
  func.func @transform_8(%arg0: i32) -> (i32, i32) {
    %c0_i32 = arith.constant 0 : i32
    %c0_i32_0 = arith.constant 0 : i32
    %c0_i32_1 = arith.constant 0 : i32
    return %c0_i32, %c0_i32_0 : i32, i32
  }
  func.func @transform_9(%arg0: i32) -> (i32, i32, i32) {
    %c0_i32 = arith.constant 0 : i32
    %c0_i32_0 = arith.constant 0 : i32
    %c0_i32_1 = arith.constant 0 : i32
    return %arg0, %c0_i32, %c0_i32_0 : i32, i32, i32
  }
}

</mosaic_0001>

<llo_original>
// kernel: tpu_custom_call.1
$region0: #{tpu_custom_call.1}
  #allocation0 [shape = 'u32[]', space=smem, size = 0x4, offset = 0x4, fixed_abs, tag = 'smem constant byte address 0x4 - core index']
  #allocation1 [shape = 'u32[72,128]{1,0:T(1,128)}', space=vmem, size = 0x9000, scoped, tag = 'internal scratch']
  #allocation2 [shape = 'f32[4,256]{1,0:T(4,128)}', space=vmem, size = 0x1000, scoped, tag = 'scratch operand']
  %s0 = inlined_call_operand.hbm [shape: f32[2,4,256], index: 0, kind: input, shape index: {}]
  %s1 = inlined_call_operand.vmem [shape: f32[4,4], index: 1, kind: input, shape index: {}]
  %s2 = inlined_call_operand.vmem [shape: f32[4,4], index: 2, kind: input, shape index: {}]
  %s3 = inlined_call_operand.vmem [shape: bf16[8,4], index: 3, kind: input, shape index: {}]
  %s4 = inlined_call_operand.vmem [shape: f32[8,1], index: 4, kind: input, shape index: {}]
  %s5 = inlined_call_operand.vmem [shape: f32[4,4], index: 5, kind: input, shape index: {}]
  %s6 = inlined_call_operand.vmem [shape: f32[1,4], index: 6, kind: input, shape index: {}]
  %s7 = inlined_call_operand.vmem [shape: bf16[4,4], index: 7, kind: input, shape index: {}]
  %s8 = inlined_call_operand.vmem [shape: f32[4,1], index: 8, kind: input, shape index: {}]
  %s9 = inlined_call_operand.hbm [shape: f32[2,4,256], index: 9, kind: output, shape index: {}]
  %s10 = sld [smem:[#allocation0]]
  $region73: #{tpu_custom_call.1} parent=0
    _
  %s12 = ssub.s32 1, %s10
  %s13 = scalar_select 0, %s12, %s10
  $region1: #{tpu_custom_call.1} parent=0
    #allocation3 [shape = 'u8[8192]{0}', space=vmem, size = 0x2000, scoped, tag = 'input window, operand 0']
    #allocation4 [shape = 's32[2]{0}', space=sflag, size = 0x8, scoped, tag = 'scoped memory for tpu_custom_call.1']
    #allocation5 [shape = 's32[2]{0}', space=sflag, size = 0x8, scoped, tag = 'scoped memory for tpu_custom_call.1']
    #allocation6 [shape = 'u8[8192]{0}', space=vmem, size = 0x2000, scoped, tag = 'output window, operand 0']
    %14 = vsyncpa [#allocation4], 0
    %s15 = scalar_lea.sflag [#allocation4], 1
    %16 = vsyncpa %s15, 0
    %17 = vsyncpa [#allocation5], 0
    %s18 = scalar_lea.sflag [#allocation5], 1
    %19 = vsyncpa %s18, 0
    loop: start=0, step=1, limit=4
    $region2: #{tpu_custom_call.1} parent=1 // loop_pre_header
      _
    $region3: #{tpu_custom_call.1} parent=1 // loop_header
      %s21 = sphi 0, %s25
      %p22 = scmp.ge.s32.totalorder %s21, 4
      %s31 = sphi 0, %s33
      %s34 = sphi 0, %s31
      %s35 = sphi 0, %s34
      %s51 = sphi 0, %s35
      %s55 = sphi 0, %s55
      %s57 = sphi 0, %s55
      %s58 = sphi 0, %s57
      %s72 = sphi 0, %s58
      %s76 = sphi 0, %s76
      %s78 = sphi 0, %s76
      %s79 = sphi 0, %s78
      %s93 = sphi 0, %s79
      %s97 = sphi 0, %s97
      %s99 = sphi 0, %s97
      %s100 = sphi 0, %s99
      %s114 = sphi 0, %s100
      %s118 = sphi 0, %s118
      %s120 = sphi 0, %s118
      %s121 = sphi 0, %s120
      %s135 = sphi 0, %s121
      %s139 = sphi 0, %s139
      %s141 = sphi 0, %s139
      %s142 = sphi 0, %s141
      %s156 = sphi 0, %s142
      %s160 = sphi 0, %s160
      %s162 = sphi 0, %s160
      %s163 = sphi 0, %s162
      %s177 = sphi 0, %s163
      %s181 = sphi 0, %s181
      %s183 = sphi 0, %s181
      %s184 = sphi 0, %s183
      %s198 = sphi 0, %s184
      %s202 = sphi 0, %s202
      %s204 = sphi 0, %s202
      %s205 = sphi 0, %s204
      %s219 = sphi 0, %s205
      %s225 = sphi 0, %s227
      %s228 = sphi 0, %s225
      %s229 = sphi 0, %s228
      %s245 = sphi 0, %s229
    $region4: #{tpu_custom_call.1} parent=1 // loop_header_branch
      %24 = sbr.rel (%p22) target = $region8
    $region5: #{tpu_custom_call.1} parent=1 // loop_body
      %s26 = ssub.s32 %s21, 1
      %s27 = ssub.s32 %s21, 2
      %s28 = sadd.s32 %s21, 1
      %s29 = ssub.s32 %s21, %s28
      %p30 = scmp.eq.s32.totalorder %s29, 0
      %s32 = sadd.s32 %s31, 1
      %s33 = scalar_select %p30, %s31, %s32
      %p36 = pneg %p30
      %p37 = scmp.eq.s32.totalorder %s21, 1
      %p38 = por %p36, %p37
      %p39 = scmp.ne.s32.totalorder %s31, %s34
      %p40 = scmp.eq.s32.totalorder %s21, 0
      %p41 = por %p39, %p40
      %p42 = scmp.ne.s32.totalorder %s31, %s34
      %p43 = scmp.eq.s32.totalorder %s26, 1
      %p44 = por %p42, %p43
      %p45 = scmp.ne.s32.totalorder %s34, %s35
      %p46 = scmp.eq.s32.totalorder %s26, 0
      %p47 = por %p45, %p46
      %p48 = scmp.ne.s32.totalorder %s34, %s35
      %p49 = scmp.eq.s32.totalorder %s27, 1
      %p50 = por %p48, %p49
      %p52 = scmp.ne.s32.totalorder %s35, %s51
      %p53 = scmp.eq.s32.totalorder %s27, 0
      %p54 = por %p52, %p53
      %s56 = sadd.s32 %s55, 1
      %p59 = scmp.eq.s32.totalorder %s21, 1
      %p60 = scmp.ne.s32.totalorder %s55, %s57
      %p61 = scmp.eq.s32.totalorder %s21, 0
      %p62 = por %p60, %p61
      %p63 = scmp.ne.s32.totalorder %s55, %s57
      %p64 = scmp.eq.s32.totalorder %s26, 1
      %p65 = por %p63, %p64
      %p66 = scmp.ne.s32.totalorder %s57, %s58
      %p67 = scmp.eq.s32.totalorder %s26, 0
      %p68 = por %p66, %p67
      %p69 = scmp.ne.s32.totalorder %s57, %s58
      %p70 = scmp.eq.s32.totalorder %s27, 1
      %p71 = por %p69, %p70
      %p73 = scmp.ne.s32.totalorder %s58, %s72
      %p74 = scmp.eq.s32.totalorder %s27, 0
      %p75 = por %p73, %p74
      %s77 = sadd.s32 %s76, 1
      %p80 = scmp.eq.s32.totalorder %s21, 1
      %p81 = scmp.ne.s32.totalorder %s76, %s78
      %p82 = scmp.eq.s32.totalorder %s21, 0
      %p83 = por %p81, %p82
      %p84 = scmp.ne.s32.totalorder %s76, %s78
      %p85 = scmp.eq.s32.totalorder %s26, 1
      %p86 = por %p84, %p85
      %p87 = scmp.ne.s32.totalorder %s78, %s79
      %p88 = scmp.eq.s32.totalorder %s26, 0
      %p89 = por %p87, %p88
      %p90 = scmp.ne.s32.totalorder %s78, %s79
      %p91 = scmp.eq.s32.totalorder %s27, 1
      %p92 = por %p90, %p91
      %p94 = scmp.ne.s32.totalorder %s79, %s93
      %p95 = scmp.eq.s32.totalorder %s27, 0
      %p96 = por %p94, %p95
      %s98 = sadd.s32 %s97, 1
      %p101 = scmp.eq.s32.totalorder %s21, 1
      %p102 = scmp.ne.s32.totalorder %s97, %s99
      %p103 = scmp.eq.s32.totalorder %s21, 0
      %p104 = por %p102, %p103
      %p105 = scmp.ne.s32.totalorder %s97, %s99
      %p106 = scmp.eq.s32.totalorder %s26, 1
      %p107 = por %p105, %p106
      %p108 = scmp.ne.s32.totalorder %s99, %s100
      %p109 = scmp.eq.s32.totalorder %s26, 0
      %p110 = por %p108, %p109
      %p111 = scmp.ne.s32.totalorder %s99, %s100
      %p112 = scmp.eq.s32.totalorder %s27, 1
      %p113 = por %p111, %p112
      %p115 = scmp.ne.s32.totalorder %s100, %s114
      %p116 = scmp.eq.s32.totalorder %s27, 0
      %p117 = por %p115, %p116
      %s119 = sadd.s32 %s118, 1
      %p122 = scmp.eq.s32.totalorder %s21, 1
      %p123 = scmp.ne.s32.totalorder %s118, %s120
      %p124 = scmp.eq.s32.totalorder %s21, 0
      %p125 = por %p123, %p124
      %p126 = scmp.ne.s32.totalorder %s118, %s120
      %p127 = scmp.eq.s32.totalorder %s26, 1
      %p128 = por %p126, %p127
      %p129 = scmp.ne.s32.totalorder %s120, %s121
      %p130 = scmp.eq.s32.totalorder %s26, 0
      %p131 = por %p129, %p130
      %p132 = scmp.ne.s32.totalorder %s120, %s121
      %p133 = scmp.eq.s32.totalorder %s27, 1
      %p134 = por %p132, %p133
      %p136 = scmp.ne.s32.totalorder %s121, %s135
      %p137 = scmp.eq.s32.totalorder %s27, 0
      %p138 = por %p136, %p137
      %s140 = sadd.s32 %s139, 1
      %p143 = scmp.eq.s32.totalorder %s21, 1
      %p144 = scmp.ne.s32.totalorder %s139, %s141
      %p145 = scmp.eq.s32.totalorder %s21, 0
      %p146 = por %p144, %p145
      %p147 = scmp.ne.s32.totalorder %s139, %s141
      %p148 = scmp.eq.s32.totalorder %s26, 1
      %p149 = por %p147, %p148
      %p150 = scmp.ne.s32.totalorder %s141, %s142
      %p151 = scmp.eq.s32.totalorder %s26, 0
      %p152 = por %p150, %p151
      %p153 = scmp.ne.s32.totalorder %s141, %s142
      %p154 = scmp.eq.s32.totalorder %s27, 1
      %p155 = por %p153, %p154
      %p157 = scmp.ne.s32.totalorder %s142, %s156
      %p158 = scmp.eq.s32.totalorder %s27, 0
      %p159 = por %p157, %p158
      %s161 = sadd.s32 %s160, 1
      %p164 = scmp.eq.s32.totalorder %s21, 1
      %p165 = scmp.ne.s32.totalorder %s160, %s162
      %p166 = scmp.eq.s32.totalorder %s21, 0
      %p167 = por %p165, %p166
      %p168 = scmp.ne.s32.totalorder %s160, %s162
      %p169 = scmp.eq.s32.totalorder %s26, 1
      %p170 = por %p168, %p169
      %p171 = scmp.ne.s32.totalorder %s162, %s163
      %p172 = scmp.eq.s32.totalorder %s26, 0
      %p173 = por %p171, %p172
      %p174 = scmp.ne.s32.totalorder %s162, %s163
      %p175 = scmp.eq.s32.totalorder %s27, 1
      %p176 = por %p174, %p175
      %p178 = scmp.ne.s32.totalorder %s163, %s177
      %p179 = scmp.eq.s32.totalorder %s27, 0
      %p180 = por %p178, %p179
      %s182 = sadd.s32 %s181, 1
      %p185 = scmp.eq.s32.totalorder %s21, 1
      %p186 = scmp.ne.s32.totalorder %s181, %s183
      %p187 = scmp.eq.s32.totalorder %s21, 0
      %p188 = por %p186, %p187
      %p189 = scmp.ne.s32.totalorder %s181, %s183
      %p190 = scmp.eq.s32.totalorder %s26, 1
      %p191 = por %p189, %p190
      %p192 = scmp.ne.s32.totalorder %s183, %s184
      %p193 = scmp.eq.s32.totalorder %s26, 0
      %p194 = por %p192, %p193
      %p195 = scmp.ne.s32.totalorder %s183, %s184
      %p196 = scmp.eq.s32.totalorder %s27, 1
      %p197 = por %p195, %p196
      %p199 = scmp.ne.s32.totalorder %s184, %s198
      %p200 = scmp.eq.s32.totalorder %s27, 0
      %p201 = por %p199, %p200
      %s203 = sadd.s32 %s202, 1
      %p206 = scmp.eq.s32.totalorder %s21, 1
      %p207 = scmp.ne.s32.totalorder %s202, %s204
      %p208 = scmp.eq.s32.totalorder %s21, 0
      %p209 = por %p207, %p208
      %p210 = scmp.ne.s32.totalorder %s202, %s204
      %p211 = scmp.eq.s32.totalorder %s26, 1
      %p212 = por %p210, %p211
      %p213 = scmp.ne.s32.totalorder %s204, %s205
      %p214 = scmp.eq.s32.totalorder %s26, 0
      %p215 = por %p213, %p214
      %p216 = scmp.ne.s32.totalorder %s204, %s205
      %p217 = scmp.eq.s32.totalorder %s27, 1
      %p218 = por %p216, %p217
      %p220 = scmp.ne.s32.totalorder %s205, %s219
      %p221 = scmp.eq.s32.totalorder %s27, 0
      %p222 = por %p220, %p221
      %s223 = ssub.s32 %s21, %s28
      %p224 = scmp.eq.s32.totalorder %s223, 0
      %s226 = sadd.s32 %s225, 1
      %s227 = scalar_select %p224, %s225, %s226
      %p230 = pneg %p224
      %p231 = scmp.eq.s32.totalorder %s21, 1
      %p232 = por %p230, %p231
      %p233 = scmp.ne.s32.totalorder %s225, %s228
      %p234 = scmp.eq.s32.totalorder %s21, 0
      %p235 = por %p233, %p234
      %p236 = scmp.ne.s32.totalorder %s225, %s228
      %p237 = scmp.eq.s32.totalorder %s26, 1
      %p238 = por %p236, %p237
      %p239 = scmp.ne.s32.totalorder %s228, %s229
      %p240 = scmp.eq.s32.totalorder %s26, 0
      %p241 = por %p239, %p240
      %p242 = scmp.ne.s32.totalorder %s228, %s229
      %p243 = scmp.eq.s32.totalorder %s27, 1
      %p244 = por %p242, %p243
      %p246 = scmp.ne.s32.totalorder %s229, %s245
      %p247 = scmp.eq.s32.totalorder %s27, 0
      %p248 = por %p246, %p247
      %p249 = scmp.le.s32.totalorder 1, %s21
      %p250 = scmp.lt.s32.totalorder %s21, 3
      %p251 = pnand %p249, %p250
      %p252 = pneg %p251
      // Predicated region
      $region9: #{tpu_custom_call.1} parent=5 // pred_check
        _
      $region10: #{tpu_custom_call.1} parent=5 // pred_check_branch
        %254 = sbr.rel (%p251) target = $region12
      $region11: #{tpu_custom_call.1} parent=5 // pred_region
        %s255 = ssub.s32 %s21, 1
        // Predicated region
        $region13: #{tpu_custom_call.1} parent=11 // pred_check
          %p256 = pneg %p68
        $region14: #{tpu_custom_call.1} parent=11 // pred_check_branch
          %258 = sbr.rel (%p256) target = $region16
        $region15: #{tpu_custom_call.1} parent=11 // pred_region
          _
        $region16: #{tpu_custom_call.1} parent=11 // pred_fallthru
          _
        // Predicated region
        $region17: #{tpu_custom_call.1} parent=11 // pred_check
          %p259 = pneg %p89
        $region18: #{tpu_custom_call.1} parent=11 // pred_check_branch
          %261 = sbr.rel (%p259) target = $region20
        $region19: #{tpu_custom_call.1} parent=11 // pred_region
          _
        $region20: #{tpu_custom_call.1} parent=11 // pred_fallthru
          _
        // Predicated region
        $region21: #{tpu_custom_call.1} parent=11 // pred_check
          %p262 = pneg %p110
        $region22: #{tpu_custom_call.1} parent=11 // pred_check_branch
          %264 = sbr.rel (%p262) target = $region24
        $region23: #{tpu_custom_call.1} parent=11 // pred_region
          _
        $region24: #{tpu_custom_call.1} parent=11 // pred_fallthru
          _
        // Predicated region
        $region25: #{tpu_custom_call.1} parent=11 // pred_check
          %p265 = pneg %p131
        $region26: #{tpu_custom_call.1} parent=11 // pred_check_branch
          %267 = sbr.rel (%p265) target = $region28
        $region27: #{tpu_custom_call.1} parent=11 // pred_region
          _
        $region28: #{tpu_custom_call.1} parent=11 // pred_fallthru
          _
        // Predicated region
        $region29: #{tpu_custom_call.1} parent=11 // pred_check
          %p268 = pneg %p152
        $region30: #{tpu_custom_call.1} parent=11 // pred_check_branch
          %270 = sbr.rel (%p268) target = $region32
        $region31: #{tpu_custom_call.1} parent=11 // pred_region
          _
        $region32: #{tpu_custom_call.1} parent=11 // pred_fallthru
          _
        // Predicated region
        $region33: #{tpu_custom_call.1} parent=11 // pred_check
          %p271 = pneg %p173
        $region34: #{tpu_custom_call.1} parent=11 // pred_check_branch
          %273 = sbr.rel (%p271) target = $region36
        $region35: #{tpu_custom_call.1} parent=11 // pred_region
          _
        $region36: #{tpu_custom_call.1} parent=11 // pred_fallthru
          _
        // Predicated region
        $region37: #{tpu_custom_call.1} parent=11 // pred_check
          %p274 = pneg %p194
        $region38: #{tpu_custom_call.1} parent=11 // pred_check_branch
          %276 = sbr.rel (%p274) target = $region40
        $region39: #{tpu_custom_call.1} parent=11 // pred_region
          _
        $region40: #{tpu_custom_call.1} parent=11 // pred_fallthru
          _
        // Predicated region
        $region41: #{tpu_custom_call.1} parent=11 // pred_check
          %p277 = pneg %p215
        $region42: #{tpu_custom_call.1} parent=11 // pred_check_branch
          %279 = sbr.rel (%p277) target = $region44
        $region43: #{tpu_custom_call.1} parent=11 // pred_region
          _
        $region44: #{tpu_custom_call.1} parent=11 // pred_fallthru
          _
      $region12: #{tpu_custom_call.1} parent=5 // pred_fallthru
        _
      %p280 = scmp.lt.s32.totalorder %s21, 2
      // Predicated region
      $region45: #{tpu_custom_call.1} parent=5 // pred_check
        %p281 = pneg %p280
      $region46: #{tpu_custom_call.1} parent=5 // pred_check_branch
        %283 = sbr.rel (%p281) target = $region48
      $region47: #{tpu_custom_call.1} parent=5 // pred_region
        // Predicated region
        $region49: #{tpu_custom_call.1} parent=47 // pred_check
          %p284 = pneg %p41
        $region50: #{tpu_custom_call.1} parent=47 // pred_check_branch
          %286 = sbr.rel (%p284) target = $region52
        $region51: #{tpu_custom_call.1} parent=47 // pred_region
          %s287 = sand.u32 %s31, 1
          %s288 = scalar_lea.sflag [#allocation4], %s287
          %s289 = sand.u32 %s31, 1
          %s290 = smul.addr %s289, 8
          %s291 = scalar_lea.vmem [#allocation3], %s290
          %293 = vsyncadd %s288, 0
          %s294 = smul.addr %s21, 2
          %s295 = smul.addr %s294, 4
          %s296 = scalar_lea.hbm %s0, %s295
          %s298 = sshll.u32 %s296, 4
          %s299 = int_to_ptr.hbm [resolvable:$true] %s298
          %s300 = sshll.u32 %s291, 4
          %s301 = int_to_ptr.vmem [resolvable:$true] %s300
          %303 = dma.hbm_to_vmem [thread:$0]  %s299, 128, %s301, %s288
        $region52: #{tpu_custom_call.1} parent=47 // pred_fallthru
          _
      $region48: #{tpu_custom_call.1} parent=5 // pred_fallthru
        _
      %p304 = scmp.le.s32.totalorder 1, %s21
      %p305 = scmp.lt.s32.totalorder %s21, 3
      %p306 = pnand %p304, %p305
      %p307 = pneg %p306
      // Predicated region
      $region53: #{tpu_custom_call.1} parent=5 // pred_check
        _
      $region54: #{tpu_custom_call.1} parent=5 // pred_check_branch
        %309 = sbr.rel (%p306) target = $region56
      $region55: #{tpu_custom_call.1} parent=5 // pred_region
        %s310 = ssub.s32 %s21, 1
        %s311 = sand.u32 %s34, 1
        %s312 = scalar_lea.sflag [#allocation4], %s311
        %s313 = sand.u32 %s34, 1
        %s314 = smul.addr %s313, 8
        %s315 = scalar_lea.vmem [#allocation3], %s314
        // Predicated region
        $region57: #{tpu_custom_call.1} parent=55 // pred_check
          %p316 = pneg %p47
        $region58: #{tpu_custom_call.1} parent=55 // pred_check_branch
          %318 = sbr.rel (%p316) target = $region60
        $region59: #{tpu_custom_call.1} parent=55 // pred_region
          %320 = dma.done %s312, 128
        $region60: #{tpu_custom_call.1} parent=55 // pred_fallthru
          _
        %s321 = sand.u32 %s34, 1
        %s322 = scalar_lea.sflag [#allocation4], %s321
        %s323 = sand.u32 %s34, 1
        %s324 = smul.addr %s323, 8
        %s325 = scalar_lea.vmem [#allocation3], %s324
        %p326 = pneg %p47
        %p327 = pneg %p44
        %p328 = pneg %p68
        %p329 = pneg %p65
        %p330 = pneg %p89
        %p331 = pneg %p86
        %p332 = pneg %p110
        %p333 = pneg %p107
        %p334 = pneg %p131
        %p335 = pneg %p128
        %p336 = pneg %p152
        %p337 = pneg %p149
        %p338 = pneg %p173
        %p339 = pneg %p170
        %p340 = pneg %p194
        %p341 = pneg %p191
        %p342 = pneg %p215
        %p343 = pneg %p212
        %p344 = pneg %p241
        %p345 = pneg %p238
        %s346 = sand.u32 %s228, 1
        %s347 = scalar_lea.sflag [#allocation5], %s346
        %s348 = sand.u32 %s228, 1
        %s349 = smul.addr %s348, 8
        %s350 = scalar_lea.vmem [#allocation6], %s349
        %v352 = vld [vmem:[%s315] sm:$0xff]
        %354 = vst [vmem:[#allocation1] ss:$2 sm:$0xff] %v352
        %v355 = vld.sshfl [vmem:[#allocation1] sm:$0xff pattern:$0x75316420]
        %v356 = vld.sshfl [vmem:[#allocation1 + $0x8] sm:$0xff pattern:$0x75316420]
        %vm359 = vcmask 1043456
        %v360 = vsel %vm359, %v355, 0.0
        %v361 = vsel %vm359, %v356, 0.0
        %v362 = vadd.f32 %v360, %v361
        %363 = vadd.xlane.f32.xlu0 %v362
        %v364 = vpop.xlane.xlu0 %363
        %v365 = vmul.f32 %v352, %v352
        %367 = vst [vmem:[#allocation1] ss:$2 sm:$0xff] %v365
        %v368 = vld.sshfl [vmem:[#allocation1] sm:$0xff pattern:$0x75316420]
        %v369 = vld.sshfl [vmem:[#allocation1 + $0x8] sm:$0xff pattern:$0x75316420]
        %v372 = vsel %vm359, %v368, 0.0
        %v373 = vsel %vm359, %v369, 0.0
        %v374 = vadd.f32 %v372, %v373
        %375 = vadd.xlane.f32.xlu0 %v374
        %v376 = vpop.xlane.xlu0 %375
        %v377 = vmul.f32 %v364, 0.00390625
        %v378 = vmul.f32 %v376, 0.00390625
        %v379 = vmul.f32 %v377, %v377
        %v380 = vsub.f32 %v378, %v379
        %v381 = vadd.f32 %v380, 1e-05
        %v382 = vrsqrt.pop %v381
        %v383 = vmul.f32 %v382, %v381
        %v384 = vmul.f32 %v383, %v382
        %v385 = vmul.f32 0.5, %v384
        %v386 = vsub.f32 1.5, %v385
        %v387 = vmul.f32 %v382, %v386
        %vm388 = vweird.f32 %v381
        %vm389 = vweird.f32 %v382
        %vm390 = vmor %vm388, %vm389
        %v391 = vsel %vm390, %v382, %v387
        %v394 = vunpack.c.l.s4 839922192
        %v395 = vunpack.c.0.s8 %v394
        %v396 = vperm.slane %v377, %v395
        %v398 = vsub.f32 %v352, %v396
        %v401 = vunpack.c.l.s4 839922192
        %v402 = vunpack.c.0.s8 %v401
        %v403 = vperm.slane %v391, %v402
        %v405 = vmul.f32 %v398, %v403
        %407 = vst [vmem:[#allocation1] ss:$2 sm:$0xff] %v405
        %v408 = vld.sshfl [vmem:[#allocation1] sm:$0xff pattern:$0x75316420]
        %v409 = vld.sshfl [vmem:[#allocation1 + $0x8] sm:$0xff pattern:$0x75316420]
        %v412 = vpack.c.bf16 %v408, %v408
        %v413 = vpack.c.bf16 %v409, %v409
        %v414 = vld [vmem:[%s3] sm:$0xf]
        %v415 = vld [vmem:[%s4] sm:$0xff]
        %417 = vset.pattern.permute.xlu0 0
        %418 = vperm.xlu0 %417, %v415
        %v419 = vpop.permute.xlu0 %418
        %vm421 = vcmask 31744
        %v423 = vsel %vm421, %v414, 0
        %vm425 = vcmask 1041408
        %v427 = vsel %vm425, %v412, 0
        %v430 = vsel %vm425, %v413, 0
        %432 = vmatpush.bf16.msra.mxu0 0
        %433 = vmatpush.bf16.msra.mxu0 0
        %434 = vmatpush.bf16.msra.mxu0 0
        %435 = vmatpush.bf16.msra.mxu0 0
        %436 = vmatpush.bf16.msra.mxu0 0
        %437 = vmatpush.bf16.msra.mxu0 0
        %438 = vmatpush.bf16.msra.mxu0 0
        %439 = vmatpush.bf16.msra.mxu0 %v427
        %440 = vmatmul.bf16.gmra.mxu0 %v423
        %v441 = vpop.f32.mrf.mxu0
        %v442 = vadd.f32 %v419, %v441
        %v443 = vpop.f32.mrf.mxu0
        %444 = vdwg.mxu0
        %445 = vmatpush.bf16.msra.mxu0 0
        %446 = vmatpush.bf16.msra.mxu0 0
        %447 = vmatpush.bf16.msra.mxu0 0
        %448 = vmatpush.bf16.msra.mxu0 0
        %449 = vmatpush.bf16.msra.mxu0 0
        %450 = vmatpush.bf16.msra.mxu0 0
        %451 = vmatpush.bf16.msra.mxu0 0
        %452 = vmatpush.bf16.msra.mxu0 %v430
        %453 = vmatmul.bf16.gmra.mxu0 %v423
        %v454 = vpop.f32.mrf.mxu0
        %v455 = vadd.f32 %v419, %v454
        %v456 = vpop.f32.mrf.mxu0
        %457 = vdwg.mxu0
        %v458 = vld [vmem:[%s5] sm:$0xf]
        %v459 = vld [vmem:[%s6] sm:$0x1]
        %v461 = vperm.slane %v459, 0
        %463 = vst [vmem:[#allocation1] ss:$2 sm:$0xff] %v405
        %v464 = vld.sshfl [vmem:[#allocation1] sm:$0xff pattern:$0x75316420]
        %v465 = vld.sshfl [vmem:[#allocation1 + $0x8] sm:$0xff pattern:$0x75316420]
        %468 = vxpose.xlu0.b32.start [1/16] %v464, 128
        %469 = vxpose.xlu0.b32.cont [2/16] 0.0, 128
        %470 = vxpose.xlu0.b32.cont [3/16] 0.0, 128
        %471 = vxpose.xlu0.b32.cont [4/16] 0.0, 128
        %472 = vxpose.xlu0.b32.cont [5/16] 0.0, 128
        %473 = vxpose.xlu0.b32.cont [6/16] 0.0, 128
        %474 = vxpose.xlu0.b32.cont [7/16] 0.0, 128
        %475 = vxpose.xlu0.b32.cont [8/16] 0.0, 128
        %476 = vxpose.xlu0.b32.cont [9/16] 0.0, 128
        %477 = vxpose.xlu0.b32.cont [10/16] 0.0, 128
        %478 = vxpose.xlu0.b32.cont [11/16] 0.0, 128
        %479 = vxpose.xlu0.b32.cont [12/16] 0.0, 128
        %480 = vxpose.xlu0.b32.cont [13/16] 0.0, 128
        %481 = vxpose.xlu0.b32.cont [14/16] 0.0, 128
        %482 = vxpose.xlu0.b32.cont [15/16] 0.0, 128
        %483 = vxpose.xlu0.b32.end [16/16] 0.0, 128
        %v484 = vpop.trf.xlu0
        %v485 = vpop.trf.xlu0
        %v486 = vpop.trf.xlu0
        %v487 = vpop.trf.xlu0
        %v488 = vpop.trf.xlu0
        %v489 = vpop.trf.xlu0
        %v490 = vpop.trf.xlu0
        %v491 = vpop.trf.xlu0
        %v492 = vpop.trf.xlu0
        %v493 = vpop.trf.xlu0
        %v494 = vpop.trf.xlu0
        %v495 = vpop.trf.xlu0
        %v496 = vpop.trf.xlu0
        %v497 = vpop.trf.xlu0
        %v498 = vpop.trf.xlu0
        %v499 = vpop.trf.xlu0
        %500 = vxpose.xlu0.b32.start [1/16] %v465, 128
        %501 = vxpose.xlu0.b32.cont [2/16] 0.0, 128
        %502 = vxpose.xlu0.b32.cont [3/16] 0.0, 128
        %503 = vxpose.xlu0.b32.cont [4/16] 0.0, 128
        %504 = vxpose.xlu0.b32.cont [5/16] 0.0, 128
        %505 = vxpose.xlu0.b32.cont [6/16] 0.0, 128
        %506 = vxpose.xlu0.b32.cont [7/16] 0.0, 128
        %507 = vxpose.xlu0.b32.cont [8/16] 0.0, 128
        %508 = vxpose.xlu0.b32.cont [9/16] 0.0, 128
        %509 = vxpose.xlu0.b32.cont [10/16] 0.0, 128
        %510 = vxpose.xlu0.b32.cont [11/16] 0.0, 128
        %511 = vxpose.xlu0.b32.cont [12/16] 0.0, 128
        %512 = vxpose.xlu0.b32.cont [13/16] 0.0, 128
        %513 = vxpose.xlu0.b32.cont [14/16] 0.0, 128
        %514 = vxpose.xlu0.b32.cont [15/16] 0.0, 128
        %515 = vxpose.xlu0.b32.end [16/16] 0.0, 128
        %v516 = vpop.trf.xlu0
        %v517 = vpop.trf.xlu0
        %v518 = vpop.trf.xlu0
        %v519 = vpop.trf.xlu0
        %v520 = vpop.trf.xlu0
        %v521 = vpop.trf.xlu0
        %v522 = vpop.trf.xlu0
        %v523 = vpop.trf.xlu0
        %v524 = vpop.trf.xlu0
        %v525 = vpop.trf.xlu0
        %v526 = vpop.trf.xlu0
        %v527 = vpop.trf.xlu0
        %v528 = vpop.trf.xlu0
        %v529 = vpop.trf.xlu0
        %v530 = vpop.trf.xlu0
        %v531 = vpop.trf.xlu0
        %v533 = vsel %vm421, %v484, 0
        %v536 = vsel %vm421, %v485, 0
        %v539 = vsel %vm421, %v486, 0
        %v542 = vsel %vm421, %v487, 0
        %v545 = vsel %vm421, %v488, 0
        %v548 = vsel %vm421, %v489, 0
        %v551 = vsel %vm421, %v490, 0
        %v554 = vsel %vm421, %v491, 0
        %v557 = vsel %vm421, %v492, 0
        %v560 = vsel %vm421, %v493, 0
        %v563 = vsel %vm421, %v494, 0
        %v566 = vsel %vm421, %v495, 0
        %v569 = vsel %vm421, %v496, 0
        %v572 = vsel %vm421, %v497, 0
        %v575 = vsel %vm421, %v498, 0
        %v578 = vsel %vm421, %v499, 0
        %v581 = vsel %vm421, %v516, 0
        %v584 = vsel %vm421, %v517, 0
        %v587 = vsel %vm421, %v518, 0
        %v590 = vsel %vm421, %v519, 0
        %v593 = vsel %vm421, %v520, 0
        %v596 = vsel %vm421, %v521, 0
        %v599 = vsel %vm421, %v522, 0
        %v602 = vsel %vm421, %v523, 0
        %v605 = vsel %vm421, %v524, 0
        %v608 = vsel %vm421, %v525, 0
        %v611 = vsel %vm421, %v526, 0
        %v614 = vsel %vm421, %v527, 0
        %v617 = vsel %vm421, %v528, 0
        %v620 = vsel %vm421, %v529, 0
        %v623 = vsel %vm421, %v530, 0
        %v626 = vsel %vm421, %v531, 0
        %v629 = vsel %vm359, %v458, 0
        %631 = vmatpush.msra.mxu0 0.0
        %632 = vmatpush.msra.mxu0 0.0
        %633 = vmatpush.msra.mxu0 0.0
        %634 = vmatpush.msra.mxu0 0.0
        %635 = vmatpush.msra.mxu0 0.0
        %636 = vmatpush.msra.mxu0 0.0
        %637 = vmatpush.msra.mxu0 0.0
        %638 = vmatpush.msra.mxu0 0.0
        %639 = vmatpush.msra.mxu0 0.0
        %640 = vmatpush.msra.mxu0 0.0
        %641 = vmatpush.msra.mxu0 0.0
        %642 = vmatpush.msra.mxu0 0.0
        %643 = vmatpush.msra.mxu0 0.0
        %644 = vmatpush.msra.mxu0 0.0
        %645 = vmatpush.msra.mxu0 0.0
        %646 = vmatpush.msra.mxu0 %v629
        %647 = vmatmul.f32.gmra.mxu0 %v533
        %v648 = vpop.f32.mrf.mxu0
        %v649 = vadd.f32 %v461, %v648
        %650 = vmatmul.f32.gmra.mxu0 %v536
        %v651 = vpop.f32.mrf.mxu0
        %v652 = vadd.f32 %v461, %v651
        %653 = vmatmul.f32.gmra.mxu0 %v539
        %v654 = vpop.f32.mrf.mxu0
        %v655 = vadd.f32 %v461, %v654
        %656 = vmatmul.f32.gmra.mxu0 %v542
        %v657 = vpop.f32.mrf.mxu0
        %v658 = vadd.f32 %v461, %v657
        %659 = vmatmul.f32.gmra.mxu0 %v545
        %v660 = vpop.f32.mrf.mxu0
        %v661 = vadd.f32 %v461, %v660
        %662 = vmatmul.f32.gmra.mxu0 %v548
        %v663 = vpop.f32.mrf.mxu0
        %v664 = vadd.f32 %v461, %v663
        %665 = vmatmul.f32.gmra.mxu0 %v551
        %v666 = vpop.f32.mrf.mxu0
        %v667 = vadd.f32 %v461, %v666
        %668 = vmatmul.f32.gmra.mxu0 %v554
        %v669 = vpop.f32.mrf.mxu0
        %v670 = vadd.f32 %v461, %v669
        %671 = vmatmul.f32.gmra.mxu0 %v557
        %v672 = vpop.f32.mrf.mxu0
        %v673 = vadd.f32 %v461, %v672
        %674 = vmatmul.f32.gmra.mxu0 %v560
        %v675 = vpop.f32.mrf.mxu0
        %v676 = vadd.f32 %v461, %v675
        %677 = vmatmul.f32.gmra.mxu0 %v563
        %v678 = vpop.f32.mrf.mxu0
        %v679 = vadd.f32 %v461, %v678
        %680 = vmatmul.f32.gmra.mxu0 %v566
        %v681 = vpop.f32.mrf.mxu0
        %v682 = vadd.f32 %v461, %v681
        %683 = vmatmul.f32.gmra.mxu0 %v569
        %v684 = vpop.f32.mrf.mxu0
        %v685 = vadd.f32 %v461, %v684
        %686 = vmatmul.f32.gmra.mxu0 %v572
        %v687 = vpop.f32.mrf.mxu0
        %v688 = vadd.f32 %v461, %v687
        %689 = vmatmul.f32.gmra.mxu0 %v575
        %v690 = vpop.f32.mrf.mxu0
        %v691 = vadd.f32 %v461, %v690
        %692 = vmatmul.f32.gmra.mxu0 %v578
        %v693 = vpop.f32.mrf.mxu0
        %v694 = vadd.f32 %v461, %v693
        %695 = vmatmul.f32.gmra.mxu0 %v581
        %v696 = vpop.f32.mrf.mxu0
        %v697 = vadd.f32 %v461, %v696
        %698 = vmatmul.f32.gmra.mxu0 %v584
        %v699 = vpop.f32.mrf.mxu0
        %v700 = vadd.f32 %v461, %v699
        %701 = vmatmul.f32.gmra.mxu0 %v587
        %v702 = vpop.f32.mrf.mxu0
        %v703 = vadd.f32 %v461, %v702
        %704 = vmatmul.f32.gmra.mxu0 %v590
        %v705 = vpop.f32.mrf.mxu0
        %v706 = vadd.f32 %v461, %v705
        %707 = vmatmul.f32.gmra.mxu0 %v593
        %v708 = vpop.f32.mrf.mxu0
        %v709 = vadd.f32 %v461, %v708
        %710 = vmatmul.f32.gmra.mxu0 %v596
        %v711 = vpop.f32.mrf.mxu0
        %v712 = vadd.f32 %v461, %v711
        %713 = vmatmul.f32.gmra.mxu0 %v599
        %v714 = vpop.f32.mrf.mxu0
        %v715 = vadd.f32 %v461, %v714
        %716 = vmatmul.f32.gmra.mxu0 %v602
        %v717 = vpop.f32.mrf.mxu0
        %v718 = vadd.f32 %v461, %v717
        %719 = vmatmul.f32.gmra.mxu0 %v605
        %v720 = vpop.f32.mrf.mxu0
        %v721 = vadd.f32 %v461, %v720
        %722 = vmatmul.f32.gmra.mxu0 %v608
        %v723 = vpop.f32.mrf.mxu0
        %v724 = vadd.f32 %v461, %v723
        %725 = vmatmul.f32.gmra.mxu0 %v611
        %v726 = vpop.f32.mrf.mxu0
        %v727 = vadd.f32 %v461, %v726
        %728 = vmatmul.f32.gmra.mxu0 %v614
        %v729 = vpop.f32.mrf.mxu0
        %v730 = vadd.f32 %v461, %v729
        %731 = vmatmul.f32.gmra.mxu0 %v617
        %v732 = vpop.f32.mrf.mxu0
        %v733 = vadd.f32 %v461, %v732
        %734 = vmatmul.f32.gmra.mxu0 %v620
        %v735 = vpop.f32.mrf.mxu0
        %v736 = vadd.f32 %v461, %v735
        %737 = vmatmul.f32.gmra.mxu0 %v623
        %v738 = vpop.f32.mrf.mxu0
        %v739 = vadd.f32 %v461, %v738
        %740 = vmatmul.f32.gmra.mxu0 %v626
        %v741 = vpop.f32.mrf.mxu0
        %v742 = vadd.f32 %v461, %v741
        %743 = vdwg.mxu0
        %v744 = vpack.c.bf16 %v455, %v442
        %v745 = vpack.c.bf16 %v652, %v649
        %v746 = vpack.c.bf16 %v658, %v655
        %v747 = vpack.c.bf16 %v664, %v661
        %v748 = vpack.c.bf16 %v670, %v667
        %v749 = vpack.c.bf16 %v676, %v673
        %v750 = vpack.c.bf16 %v682, %v679
        %v751 = vpack.c.bf16 %v688, %v685
        %v752 = vpack.c.bf16 %v694, %v691
        %v753 = vpack.c.bf16 %v700, %v697
        %v754 = vpack.c.bf16 %v706, %v703
        %v755 = vpack.c.bf16 %v712, %v709
        %v756 = vpack.c.bf16 %v718, %v715
        %v757 = vpack.c.bf16 %v724, %v721
        %v758 = vpack.c.bf16 %v730, %v727
        %v759 = vpack.c.bf16 %v736, %v733
        %v760 = vpack.c.bf16 %v742, %v739
        %v762 = vunpack.c.l.b16 %v744
        %v763 = vunpack.c.h.b16 %v744
        %v764 = vpack.c.b16 %v762, %v762
        %v765 = vpack.c.b16 %v763, %v763
        %v767 = vsel %vm421, %v745, 0
        %v770 = vsel %vm421, %v746, 0
        %v773 = vsel %vm421, %v747, 0
        %v776 = vsel %vm421, %v748, 0
        %v779 = vsel %vm421, %v749, 0
        %v782 = vsel %vm421, %v750, 0
        %v785 = vsel %vm421, %v751, 0
        %v788 = vsel %vm421, %v752, 0
        %v791 = vsel %vm421, %v753, 0
        %v794 = vsel %vm421, %v754, 0
        %v797 = vsel %vm421, %v755, 0
        %v800 = vsel %vm421, %v756, 0
        %v803 = vsel %vm421, %v757, 0
        %v806 = vsel %vm421, %v758, 0
        %v809 = vsel %vm421, %v759, 0
        %v812 = vsel %vm421, %v760, 0
        %v815 = vsel %vm425, %v764, 0
        %v818 = vsel %vm425, %v765, 0
        %820 = vmatpush.bf16.msra.mxu0 0
        %821 = vmatpush.bf16.msra.mxu0 0
        %822 = vmatpush.bf16.msra.mxu0 0
        %823 = vmatpush.bf16.msra.mxu0 0
        %824 = vmatpush.bf16.msra.mxu0 0
        %825 = vmatpush.bf16.msra.mxu0 0
        %826 = vmatpush.bf16.msra.mxu0 0
        %827 = vmatpush.bf16.msra.mxu0 %v815
        %828 = vmatmul.bf16.gmra.mxu0 %v767
        %v829 = vpop.f32.mrf.mxu0
        %v830 = vadd.f32 0.0, %v829
        %v831 = vpop.f32.mrf.mxu0
        %v832 = vadd.f32 0.0, %v831
        %833 = vmatmul.bf16.gmra.mxu0 %v770
        %v834 = vpop.f32.mrf.mxu0
        %v835 = vadd.f32 0.0, %v834
        %v836 = vpop.f32.mrf.mxu0
        %v837 = vadd.f32 0.0, %v836
        %838 = vmatmul.bf16.gmra.mxu0 %v773
        %v839 = vpop.f32.mrf.mxu0
        %v840 = vadd.f32 0.0, %v839
        %v841 = vpop.f32.mrf.mxu0
        %v842 = vadd.f32 0.0, %v841
        %843 = vmatmul.bf16.gmra.mxu0 %v776
        %v844 = vpop.f32.mrf.mxu0
        %v845 = vadd.f32 0.0, %v844
        %v846 = vpop.f32.mrf.mxu0
        %v847 = vadd.f32 0.0, %v846
        %848 = vmatmul.bf16.gmra.mxu0 %v779
        %v849 = vpop.f32.mrf.mxu0
        %v850 = vadd.f32 0.0, %v849
        %v851 = vpop.f32.mrf.mxu0
        %v852 = vadd.f32 0.0, %v851
        %853 = vmatmul.bf16.gmra.mxu0 %v782
        %v854 = vpop.f32.mrf.mxu0
        %v855 = vadd.f32 0.0, %v854
        %v856 = vpop.f32.mrf.mxu0
        %v857 = vadd.f32 0.0, %v856
        %858 = vmatmul.bf16.gmra.mxu0 %v785
        %v859 = vpop.f32.mrf.mxu0
        %v860 = vadd.f32 0.0, %v859
        %v861 = vpop.f32.mrf.mxu0
        %v862 = vadd.f32 0.0, %v861
        %863 = vmatmul.bf16.gmra.mxu0 %v788
        %v864 = vpop.f32.mrf.mxu0
        %v865 = vadd.f32 0.0, %v864
        %v866 = vpop.f32.mrf.mxu0
        %v867 = vadd.f32 0.0, %v866
        %868 = vmatmul.bf16.gmra.mxu0 %v791
        %v869 = vpop.f32.mrf.mxu0
        %v870 = vadd.f32 0.0, %v869
        %v871 = vpop.f32.mrf.mxu0
        %v872 = vadd.f32 0.0, %v871
        %873 = vmatmul.bf16.gmra.mxu0 %v794
        %v874 = vpop.f32.mrf.mxu0
        %v875 = vadd.f32 0.0, %v874
        %v876 = vpop.f32.mrf.mxu0
        %v877 = vadd.f32 0.0, %v876
        %878 = vmatmul.bf16.gmra.mxu0 %v797
        %v879 = vpop.f32.mrf.mxu0
        %v880 = vadd.f32 0.0, %v879
        %v881 = vpop.f32.mrf.mxu0
        %v882 = vadd.f32 0.0, %v881
        %883 = vmatmul.bf16.gmra.mxu0 %v800
        %v884 = vpop.f32.mrf.mxu0
        %v885 = vadd.f32 0.0, %v884
        %v886 = vpop.f32.mrf.mxu0
        %v887 = vadd.f32 0.0, %v886
        %888 = vmatmul.bf16.gmra.mxu0 %v803
        %v889 = vpop.f32.mrf.mxu0
        %v890 = vadd.f32 0.0, %v889
        %v891 = vpop.f32.mrf.mxu0
        %v892 = vadd.f32 0.0, %v891
        %893 = vmatmul.bf16.gmra.mxu0 %v806
        %v894 = vpop.f32.mrf.mxu0
        %v895 = vadd.f32 0.0, %v894
        %v896 = vpop.f32.mrf.mxu0
        %v897 = vadd.f32 0.0, %v896
        %898 = vmatmul.bf16.gmra.mxu0 %v809
        %v899 = vpop.f32.mrf.mxu0
        %v900 = vadd.f32 0.0, %v899
        %v901 = vpop.f32.mrf.mxu0
        %v902 = vadd.f32 0.0, %v901
        %903 = vmatmul.bf16.gmra.mxu0 %v812
        %v904 = vpop.f32.mrf.mxu0
        %v905 = vadd.f32 0.0, %v904
        %v906 = vpop.f32.mrf.mxu0
        %v907 = vadd.f32 0.0, %v906
        %908 = vdwg.mxu0
        %909 = vmatpush.bf16.msra.mxu0 0
        %910 = vmatpush.bf16.msra.mxu0 0
        %911 = vmatpush.bf16.msra.mxu0 0
        %912 = vmatpush.bf16.msra.mxu0 0
        %913 = vmatpush.bf16.msra.mxu0 0
        %914 = vmatpush.bf16.msra.mxu0 0
        %915 = vmatpush.bf16.msra.mxu0 0
        %916 = vmatpush.bf16.msra.mxu0 %v818
        %917 = vmatmul.bf16.gmra.mxu0 %v767
        %v918 = vpop.f32.mrf.mxu0
        %v919 = vadd.f32 0.0, %v918
        %v920 = vpop.f32.mrf.mxu0
        %v921 = vadd.f32 0.0, %v920
        %922 = vmatmul.bf16.gmra.mxu0 %v770
        %v923 = vpop.f32.mrf.mxu0
        %v924 = vadd.f32 0.0, %v923
        %v925 = vpop.f32.mrf.mxu0
        %v926 = vadd.f32 0.0, %v925
        %927 = vmatmul.bf16.gmra.mxu0 %v773
        %v928 = vpop.f32.mrf.mxu0
        %v929 = vadd.f32 0.0, %v928
        %v930 = vpop.f32.mrf.mxu0
        %v931 = vadd.f32 0.0, %v930
        %932 = vmatmul.bf16.gmra.mxu0 %v776
        %v933 = vpop.f32.mrf.mxu0
        %v934 = vadd.f32 0.0, %v933
        %v935 = vpop.f32.mrf.mxu0
        %v936 = vadd.f32 0.0, %v935
        %937 = vmatmul.bf16.gmra.mxu0 %v779
        %v938 = vpop.f32.mrf.mxu0
        %v939 = vadd.f32 0.0, %v938
        %v940 = vpop.f32.mrf.mxu0
        %v941 = vadd.f32 0.0, %v940
        %942 = vmatmul.bf16.gmra.mxu0 %v782
        %v943 = vpop.f32.mrf.mxu0
        %v944 = vadd.f32 0.0, %v943
        %v945 = vpop.f32.mrf.mxu0
        %v946 = vadd.f32 0.0, %v945
        %947 = vmatmul.bf16.gmra.mxu0 %v785
        %v948 = vpop.f32.mrf.mxu0
        %v949 = vadd.f32 0.0, %v948
        %v950 = vpop.f32.mrf.mxu0
        %v951 = vadd.f32 0.0, %v950
        %952 = vmatmul.bf16.gmra.mxu0 %v788
        %v953 = vpop.f32.mrf.mxu0
        %v954 = vadd.f32 0.0, %v953
        %v955 = vpop.f32.mrf.mxu0
        %v956 = vadd.f32 0.0, %v955
        %957 = vmatmul.bf16.gmra.mxu0 %v791
        %v958 = vpop.f32.mrf.mxu0
        %v959 = vadd.f32 0.0, %v958
        %v960 = vpop.f32.mrf.mxu0
        %v961 = vadd.f32 0.0, %v960
        %962 = vmatmul.bf16.gmra.mxu0 %v794
        %v963 = vpop.f32.mrf.mxu0
        %v964 = vadd.f32 0.0, %v963
        %v965 = vpop.f32.mrf.mxu0
        %v966 = vadd.f32 0.0, %v965
        %967 = vmatmul.bf16.gmra.mxu0 %v797
        %v968 = vpop.f32.mrf.mxu0
        %v969 = vadd.f32 0.0, %v968
        %v970 = vpop.f32.mrf.mxu0
        %v971 = vadd.f32 0.0, %v970
        %972 = vmatmul.bf16.gmra.mxu0 %v800
        %v973 = vpop.f32.mrf.mxu0
        %v974 = vadd.f32 0.0, %v973
        %v975 = vpop.f32.mrf.mxu0
        %v976 = vadd.f32 0.0, %v975
        %977 = vmatmul.bf16.gmra.mxu0 %v803
        %v978 = vpop.f32.mrf.mxu0
        %v979 = vadd.f32 0.0, %v978
        %v980 = vpop.f32.mrf.mxu0
        %v981 = vadd.f32 0.0, %v980
        %982 = vmatmul.bf16.gmra.mxu0 %v806
        %v983 = vpop.f32.mrf.mxu0
        %v984 = vadd.f32 0.0, %v983
        %v985 = vpop.f32.mrf.mxu0
        %v986 = vadd.f32 0.0, %v985
        %987 = vmatmul.bf16.gmra.mxu0 %v809
        %v988 = vpop.f32.mrf.mxu0
        %v989 = vadd.f32 0.0, %v988
        %v990 = vpop.f32.mrf.mxu0
        %v991 = vadd.f32 0.0, %v990
        %992 = vmatmul.bf16.gmra.mxu0 %v812
        %v993 = vpop.f32.mrf.mxu0
        %v994 = vadd.f32 0.0, %v993
        %v995 = vpop.f32.mrf.mxu0
        %v996 = vadd.f32 0.0, %v995
        %997 = vdwg.mxu0
        %v998 = vmax.f32 %v830, %v835
        %v999 = vmax.f32 %v832, %v837
        %v1000 = vmax.f32 %v998, %v840
        %v1001 = vmax.f32 %v999, %v842
        %v1002 = vmax.f32 %v1000, %v845
        %v1003 = vmax.f32 %v1001, %v847
        %v1004 = vmax.f32 %v1002, %v850
        %v1005 = vmax.f32 %v1003, %v852
        %v1006 = vmax.f32 %v1004, %v855
        %v1007 = vmax.f32 %v1005, %v857
        %v1008 = vmax.f32 %v1006, %v860
        %v1009 = vmax.f32 %v1007, %v862
        %v1010 = vmax.f32 %v1008, %v865
        %v1011 = vmax.f32 %v1009, %v867
        %v1012 = vmax.f32 %v1010, %v870
        %v1013 = vmax.f32 %v1011, %v872
        %v1014 = vmax.f32 %v1012, %v875
        %v1015 = vmax.f32 %v1013, %v877
        %v1016 = vmax.f32 %v1014, %v880
        %v1017 = vmax.f32 %v1015, %v882
        %v1018 = vmax.f32 %v1016, %v885
        %v1019 = vmax.f32 %v1017, %v887
        %v1020 = vmax.f32 %v1018, %v890
        %v1021 = vmax.f32 %v1019, %v892
        %v1022 = vmax.f32 %v1020, %v895
        %v1023 = vmax.f32 %v1021, %v897
        %v1024 = vmax.f32 %v1022, %v900
        %v1025 = vmax.f32 %v1023, %v902
        %v1026 = vmax.f32 %v1024, %v905
        %v1027 = vmax.f32 %v1025, %v907
        %v1028 = vmax.f32 %v1026, %v1027
        %v1029 = vrot.slane %v1028, 4
        %v1030 = vmax.f32 %v1028, %v1029
        %v1031 = vrot.slane %v1030, 2
        %v1032 = vmax.f32 %v1030, %v1031
        %v1033 = vrot.slane %v1032, 1
        %v1034 = vmax.f32 %v1032, %v1033
        %v1035 = vmax.f32 %v919, %v924
        %v1036 = vmax.f32 %v921, %v926
        %v1037 = vmax.f32 %v1035, %v929
        %v1038 = vmax.f32 %v1036, %v931
        %v1039 = vmax.f32 %v1037, %v934
        %v1040 = vmax.f32 %v1038, %v936
        %v1041 = vmax.f32 %v1039, %v939
        %v1042 = vmax.f32 %v1040, %v941
        %v1043 = vmax.f32 %v1041, %v944
        %v1044 = vmax.f32 %v1042, %v946
        %v1045 = vmax.f32 %v1043, %v949
        %v1046 = vmax.f32 %v1044, %v951
        %v1047 = vmax.f32 %v1045, %v954
        %v1048 = vmax.f32 %v1046, %v956
        %v1049 = vmax.f32 %v1047, %v959
        %v1050 = vmax.f32 %v1048, %v961
        %v1051 = vmax.f32 %v1049, %v964
        %v1052 = vmax.f32 %v1050, %v966
        %v1053 = vmax.f32 %v1051, %v969
        %v1054 = vmax.f32 %v1052, %v971
        %v1055 = vmax.f32 %v1053, %v974
        %v1056 = vmax.f32 %v1054, %v976
        %v1057 = vmax.f32 %v1055, %v979
        %v1058 = vmax.f32 %v1056, %v981
        %v1059 = vmax.f32 %v1057, %v984
        %v1060 = vmax.f32 %v1058, %v986
        %v1061 = vmax.f32 %v1059, %v989
        %v1062 = vmax.f32 %v1060, %v991
        %v1063 = vmax.f32 %v1061, %v994
        %v1064 = vmax.f32 %v1062, %v996
        %v1065 = vmax.f32 %v1063, %v1064
        %v1066 = vrot.slane %v1065, 4
        %v1067 = vmax.f32 %v1065, %v1066
        %v1068 = vrot.slane %v1067, 2
        %v1069 = vmax.f32 %v1067, %v1068
        %v1070 = vrot.slane %v1069, 1
        %v1071 = vmax.f32 %v1069, %v1070
        %v1072 = vsub.f32 %v830, %v1034
        %v1073 = vsub.f32 %v919, %v1071
        %v1074 = vsub.f32 %v832, %v1034
        %v1075 = vsub.f32 %v921, %v1071
        %v1076 = vsub.f32 %v835, %v1034
        %v1077 = vsub.f32 %v924, %v1071
        %v1078 = vsub.f32 %v837, %v1034
        %v1079 = vsub.f32 %v926, %v1071
        %v1080 = vsub.f32 %v840, %v1034
        %v1081 = vsub.f32 %v929, %v1071
        %v1082 = vsub.f32 %v842, %v1034
        %v1083 = vsub.f32 %v931, %v1071
        %v1084 = vsub.f32 %v845, %v1034
        %v1085 = vsub.f32 %v934, %v1071
        %v1086 = vsub.f32 %v847, %v1034
        %v1087 = vsub.f32 %v936, %v1071
        %v1088 = vsub.f32 %v850, %v1034
        %v1089 = vsub.f32 %v939, %v1071
        %v1090 = vsub.f32 %v852, %v1034
        %v1091 = vsub.f32 %v941, %v1071
        %v1092 = vsub.f32 %v855, %v1034
        %v1093 = vsub.f32 %v944, %v1071
        %v1094 = vsub.f32 %v857, %v1034
        %v1095 = vsub.f32 %v946, %v1071
        %v1096 = vsub.f32 %v860, %v1034
        %v1097 = vsub.f32 %v949, %v1071
        %v1098 = vsub.f32 %v862, %v1034
        %v1099 = vsub.f32 %v951, %v1071
        %v1100 = vsub.f32 %v865, %v1034
        %v1101 = vsub.f32 %v954, %v1071
        %v1102 = vsub.f32 %v867, %v1034
        %v1103 = vsub.f32 %v956, %v1071
        %v1104 = vsub.f32 %v870, %v1034
        %v1105 = vsub.f32 %v959, %v1071
        %v1106 = vsub.f32 %v872, %v1034
        %v1107 = vsub.f32 %v961, %v1071
        %v1108 = vsub.f32 %v875, %v1034
        %v1109 = vsub.f32 %v964, %v1071
        %v1110 = vsub.f32 %v877, %v1034
        %v1111 = vsub.f32 %v966, %v1071
        %v1112 = vsub.f32 %v880, %v1034
        %v1113 = vsub.f32 %v969, %v1071
        %v1114 = vsub.f32 %v882, %v1034
        %v1115 = vsub.f32 %v971, %v1071
        %v1116 = vsub.f32 %v885, %v1034
        %v1117 = vsub.f32 %v974, %v1071
        %v1118 = vsub.f32 %v887, %v1034
        %v1119 = vsub.f32 %v976, %v1071
        %v1120 = vsub.f32 %v890, %v1034
        %v1121 = vsub.f32 %v979, %v1071
        %v1122 = vsub.f32 %v892, %v1034
        %v1123 = vsub.f32 %v981, %v1071
        %v1124 = vsub.f32 %v895, %v1034
        %v1125 = vsub.f32 %v984, %v1071
        %v1126 = vsub.f32 %v897, %v1034
        %v1127 = vsub.f32 %v986, %v1071
        %v1128 = vsub.f32 %v900, %v1034
        %v1129 = vsub.f32 %v989, %v1071
        %v1130 = vsub.f32 %v902, %v1034
        %v1131 = vsub.f32 %v991, %v1071
        %v1132 = vsub.f32 %v905, %v1034
        %v1133 = vsub.f32 %v994, %v1071
        %v1134 = vsub.f32 %v907, %v1034
        %v1135 = vsub.f32 %v996, %v1071
        %v1136 = vmul.f32 %v1072, 1.442695
        %v1137 = vpow.pop %v1136
        %v1138 = vmul.f32 %v1073, 1.442695
        %v1139 = vpow.pop %v1138
        %v1140 = vmul.f32 %v1074, 1.442695
        %v1141 = vpow.pop %v1140
        %v1142 = vmul.f32 %v1075, 1.442695
        %v1143 = vpow.pop %v1142
        %v1144 = vmul.f32 %v1076, 1.442695
        %v1145 = vpow.pop %v1144
        %v1146 = vmul.f32 %v1077, 1.442695
        %v1147 = vpow.pop %v1146
        %v1148 = vmul.f32 %v1078, 1.442695
        %v1149 = vpow.pop %v1148
        %v1150 = vmul.f32 %v1079, 1.442695
        %v1151 = vpow.pop %v1150
        %v1152 = vmul.f32 %v1080, 1.442695
        %v1153 = vpow.pop %v1152
        %v1154 = vmul.f32 %v1081, 1.442695
        %v1155 = vpow.pop %v1154
        %v1156 = vmul.f32 %v1082, 1.442695
        %v1157 = vpow.pop %v1156
        %v1158 = vmul.f32 %v1083, 1.442695
        %v1159 = vpow.pop %v1158
        %v1160 = vmul.f32 %v1084, 1.442695
        %v1161 = vpow.pop %v1160
        %v1162 = vmul.f32 %v1085, 1.442695
        %v1163 = vpow.pop %v1162
        %v1164 = vmul.f32 %v1086, 1.442695
        %v1165 = vpow.pop %v1164
        %v1166 = vmul.f32 %v1087, 1.442695
        %v1167 = vpow.pop %v1166
        %v1168 = vmul.f32 %v1088, 1.442695
        %v1169 = vpow.pop %v1168
        %v1170 = vmul.f32 %v1089, 1.442695
        %v1171 = vpow.pop %v1170
        %v1172 = vmul.f32 %v1090, 1.442695
        %v1173 = vpow.pop %v1172
        %v1174 = vmul.f32 %v1091, 1.442695
        %v1175 = vpow.pop %v1174
        %v1176 = vmul.f32 %v1092, 1.442695
        %v1177 = vpow.pop %v1176
        %v1178 = vmul.f32 %v1093, 1.442695
        %v1179 = vpow.pop %v1178
        %v1180 = vmul.f32 %v1094, 1.442695
        %v1181 = vpow.pop %v1180
        %v1182 = vmul.f32 %v1095, 1.442695
        %v1183 = vpow.pop %v1182
        %v1184 = vmul.f32 %v1096, 1.442695
        %v1185 = vpow.pop %v1184
        %v1186 = vmul.f32 %v1097, 1.442695
        %v1187 = vpow.pop %v1186
        %v1188 = vmul.f32 %v1098, 1.442695
        %v1189 = vpow.pop %v1188
        %v1190 = vmul.f32 %v1099, 1.442695
        %v1191 = vpow.pop %v1190
        %v1192 = vmul.f32 %v1100, 1.442695
        %v1193 = vpow.pop %v1192
        %v1194 = vmul.f32 %v1101, 1.442695
        %v1195 = vpow.pop %v1194
        %v1196 = vmul.f32 %v1102, 1.442695
        %v1197 = vpow.pop %v1196
        %v1198 = vmul.f32 %v1103, 1.442695
        %v1199 = vpow.pop %v1198
        %v1200 = vmul.f32 %v1104, 1.442695
        %v1201 = vpow.pop %v1200
        %v1202 = vmul.f32 %v1105, 1.442695
        %v1203 = vpow.pop %v1202
        %v1204 = vmul.f32 %v1106, 1.442695
        %v1205 = vpow.pop %v1204
        %v1206 = vmul.f32 %v1107, 1.442695
        %v1207 = vpow.pop %v1206
        %v1208 = vmul.f32 %v1108, 1.442695
        %v1209 = vpow.pop %v1208
        %v1210 = vmul.f32 %v1109, 1.442695
        %v1211 = vpow.pop %v1210
        %v1212 = vmul.f32 %v1110, 1.442695
        %v1213 = vpow.pop %v1212
        %v1214 = vmul.f32 %v1111, 1.442695
        %v1215 = vpow.pop %v1214
        %v1216 = vmul.f32 %v1112, 1.442695
        %v1217 = vpow.pop %v1216
        %v1218 = vmul.f32 %v1113, 1.442695
        %v1219 = vpow.pop %v1218
        %v1220 = vmul.f32 %v1114, 1.442695
        %v1221 = vpow.pop %v1220
        %v1222 = vmul.f32 %v1115, 1.442695
        %v1223 = vpow.pop %v1222
        %v1224 = vmul.f32 %v1116, 1.442695
        %v1225 = vpow.pop %v1224
        %v1226 = vmul.f32 %v1117, 1.442695
        %v1227 = vpow.pop %v1226
        %v1228 = vmul.f32 %v1118, 1.442695
        %v1229 = vpow.pop %v1228
        %v1230 = vmul.f32 %v1119, 1.442695
        %v1231 = vpow.pop %v1230
        %v1232 = vmul.f32 %v1120, 1.442695
        %v1233 = vpow.pop %v1232
        %v1234 = vmul.f32 %v1121, 1.442695
        %v1235 = vpow.pop %v1234
        %v1236 = vmul.f32 %v1122, 1.442695
        %v1237 = vpow.pop %v1236
        %v1238 = vmul.f32 %v1123, 1.442695
        %v1239 = vpow.pop %v1238
        %v1240 = vmul.f32 %v1124, 1.442695
        %v1241 = vpow.pop %v1240
        %v1242 = vmul.f32 %v1125, 1.442695
        %v1243 = vpow.pop %v1242
        %v1244 = vmul.f32 %v1126, 1.442695
        %v1245 = vpow.pop %v1244
        %v1246 = vmul.f32 %v1127, 1.442695
        %v1247 = vpow.pop %v1246
        %v1248 = vmul.f32 %v1128, 1.442695
        %v1249 = vpow.pop %v1248
        %v1250 = vmul.f32 %v1129, 1.442695
        %v1251 = vpow.pop %v1250
        %v1252 = vmul.f32 %v1130, 1.442695
        %v1253 = vpow.pop %v1252
        %v1254 = vmul.f32 %v1131, 1.442695
        %v1255 = vpow.pop %v1254
        %v1256 = vmul.f32 %v1132, 1.442695
        %v1257 = vpow.pop %v1256
        %v1258 = vmul.f32 %v1133, 1.442695
        %v1259 = vpow.pop %v1258
        %v1260 = vmul.f32 %v1134, 1.442695
        %v1261 = vpow.pop %v1260
        %v1262 = vmul.f32 %v1135, 1.442695
        %v1263 = vpow.pop %v1262
        %v1264 = vadd.f32 %v1137, %v1141
        %v1265 = vadd.f32 %v1264, %v1145
        %v1266 = vadd.f32 %v1265, %v1149
        %v1267 = vadd.f32 %v1266, %v1153
        %v1268 = vadd.f32 %v1267, %v1157
        %v1269 = vadd.f32 %v1268, %v1161
        %v1270 = vadd.f32 %v1269, %v1165
        %v1271 = vadd.f32 %v1270, %v1169
        %v1272 = vadd.f32 %v1271, %v1173
        %v1273 = vadd.f32 %v1272, %v1177
        %v1274 = vadd.f32 %v1273, %v1181
        %v1275 = vadd.f32 %v1274, %v1185
        %v1276 = vadd.f32 %v1275, %v1189
        %v1277 = vadd.f32 %v1276, %v1193
        %v1278 = vadd.f32 %v1277, %v1197
        %v1279 = vadd.f32 %v1278, %v1201
        %v1280 = vadd.f32 %v1279, %v1205
        %v1281 = vadd.f32 %v1280, %v1209
        %v1282 = vadd.f32 %v1281, %v1213
        %v1283 = vadd.f32 %v1282, %v1217
        %v1284 = vadd.f32 %v1283, %v1221
        %v1285 = vadd.f32 %v1284, %v1225
        %v1286 = vadd.f32 %v1285, %v1229
        %v1287 = vadd.f32 %v1286, %v1233
        %v1288 = vadd.f32 %v1287, %v1237
        %v1289 = vadd.f32 %v1288, %v1241
        %v1290 = vadd.f32 %v1289, %v1245
        %v1291 = vadd.f32 %v1290, %v1249
        %v1292 = vadd.f32 %v1291, %v1253
        %v1293 = vadd.f32 %v1292, %v1257
        %v1294 = vadd.f32 %v1293, %v1261
        %v1295 = vrot.slane %v1294, 4
        %v1296 = vadd.f32 %v1294, %v1295
        %v1297 = vrot.slane %v1296, 2
        %v1298 = vadd.f32 %v1296, %v1297
        %v1299 = vrot.slane %v1298, 1
        %v1300 = vadd.f32 %v1298, %v1299
        %v1301 = vadd.f32 %v1139, %v1143
        %v1302 = vadd.f32 %v1301, %v1147
        %v1303 = vadd.f32 %v1302, %v1151
        %v1304 = vadd.f32 %v1303, %v1155
        %v1305 = vadd.f32 %v1304, %v1159
        %v1306 = vadd.f32 %v1305, %v1163
        %v1307 = vadd.f32 %v1306, %v1167
        %v1308 = vadd.f32 %v1307, %v1171
        %v1309 = vadd.f32 %v1308, %v1175
        %v1310 = vadd.f32 %v1309, %v1179
        %v1311 = vadd.f32 %v1310, %v1183
        %v1312 = vadd.f32 %v1311, %v1187
        %v1313 = vadd.f32 %v1312, %v1191
        %v1314 = vadd.f32 %v1313, %v1195
        %v1315 = vadd.f32 %v1314, %v1199
        %v1316 = vadd.f32 %v1315, %v1203
        %v1317 = vadd.f32 %v1316, %v1207
        %v1318 = vadd.f32 %v1317, %v1211
        %v1319 = vadd.f32 %v1318, %v1215
        %v1320 = vadd.f32 %v1319, %v1219
        %v1321 = vadd.f32 %v1320, %v1223
        %v1322 = vadd.f32 %v1321, %v1227
        %v1323 = vadd.f32 %v1322, %v1231
        %v1324 = vadd.f32 %v1323, %v1235
        %v1325 = vadd.f32 %v1324, %v1239
        %v1326 = vadd.f32 %v1325, %v1243
        %v1327 = vadd.f32 %v1326, %v1247
        %v1328 = vadd.f32 %v1327, %v1251
        %v1329 = vadd.f32 %v1328, %v1255
        %v1330 = vadd.f32 %v1329, %v1259
        %v1331 = vadd.f32 %v1330, %v1263
        %v1332 = vrot.slane %v1331, 4
        %v1333 = vadd.f32 %v1331, %v1332
        %v1334 = vrot.slane %v1333, 2
        %v1335 = vadd.f32 %v1333, %v1334
        %v1336 = vrot.slane %v1335, 1
        %v1337 = vadd.f32 %v1335, %v1336
        %v1338 = vpack.c.bf16 %v1141, %v1137
        %v1339 = vpack.c.bf16 %v1143, %v1139
        %v1340 = vpack.c.bf16 %v1149, %v1145
        %v1341 = vpack.c.bf16 %v1151, %v1147
        %v1342 = vpack.c.bf16 %v1157, %v1153
        %v1343 = vpack.c.bf16 %v1159, %v1155
        %v1344 = vpack.c.bf16 %v1165, %v1161
        %v1345 = vpack.c.bf16 %v1167, %v1163
        %v1346 = vpack.c.bf16 %v1173, %v1169
        %v1347 = vpack.c.bf16 %v1175, %v1171
        %v1348 = vpack.c.bf16 %v1181, %v1177
        %v1349 = vpack.c.bf16 %v1183, %v1179
        %v1350 = vpack.c.bf16 %v1189, %v1185
        %v1351 = vpack.c.bf16 %v1191, %v1187
        %v1352 = vpack.c.bf16 %v1197, %v1193
        %v1353 = vpack.c.bf16 %v1199, %v1195
        %v1354 = vpack.c.bf16 %v1205, %v1201
        %v1355 = vpack.c.bf16 %v1207, %v1203
        %v1356 = vpack.c.bf16 %v1213, %v1209
        %v1357 = vpack.c.bf16 %v1215, %v1211
        %v1358 = vpack.c.bf16 %v1221, %v1217
        %v1359 = vpack.c.bf16 %v1223, %v1219
        %v1360 = vpack.c.bf16 %v1229, %v1225
        %v1361 = vpack.c.bf16 %v1231, %v1227
        %v1362 = vpack.c.bf16 %v1237, %v1233
        %v1363 = vpack.c.bf16 %v1239, %v1235
        %v1364 = vpack.c.bf16 %v1245, %v1241
        %v1365 = vpack.c.bf16 %v1247, %v1243
        %v1366 = vpack.c.bf16 %v1253, %v1249
        %v1367 = vpack.c.bf16 %v1255, %v1251
        %v1368 = vpack.c.bf16 %v1261, %v1257
        %v1369 = vpack.c.bf16 %v1263, %v1259
        %v1370 = vrot.slane %v764, 2
        %v1371 = vrot.slane %v765, 2
        %1374 = vmatpush.bf16.msra.mxu0 %v1352
        %1375 = vmatpush.bf16.msra.mxu0 %v1350
        %1376 = vmatpush.bf16.msra.mxu0 %v1348
        %1377 = vmatpush.bf16.msra.mxu0 %v1346
        %1378 = vmatpush.bf16.msra.mxu0 %v1344
        %1379 = vmatpush.bf16.msra.mxu0 %v1342
        %1380 = vmatpush.bf16.msra.mxu0 %v1340
        %1381 = vmatpush.bf16.msra.mxu0 %v1338
        %1382 = vmatmul.bf16.gmra.mxu0 %v1370
        %v1383 = vpop.f32.mrf.mxu0
        %v1384 = vadd.f32 0.0, %v1383
        %v1385 = vpop.f32.mrf.mxu0
        %1386 = vdwg.mxu0
        %1387 = vmatpush.bf16.msra.mxu0 %v1368
        %1388 = vmatpush.bf16.msra.mxu0 %v1366
        %1389 = vmatpush.bf16.msra.mxu0 %v1364
        %1390 = vmatpush.bf16.msra.mxu0 %v1362
        %1391 = vmatpush.bf16.msra.mxu0 %v1360
        %1392 = vmatpush.bf16.msra.mxu0 %v1358
        %1393 = vmatpush.bf16.msra.mxu0 %v1356
        %1394 = vmatpush.bf16.msra.mxu0 %v1354
        %1395 = vmatmul.bf16.gmra.mxu0 %v1371
        %v1396 = vpop.f32.mrf.mxu0
        %v1397 = vadd.f32 %v1384, %v1396
        %v1398 = vpop.f32.mrf.mxu0
        %1399 = vdwg.mxu0
        %1400 = vmatpush.bf16.msra.mxu0 %v1353
        %1401 = vmatpush.bf16.msra.mxu0 %v1351
        %1402 = vmatpush.bf16.msra.mxu0 %v1349
        %1403 = vmatpush.bf16.msra.mxu0 %v1347
        %1404 = vmatpush.bf16.msra.mxu0 %v1345
        %1405 = vmatpush.bf16.msra.mxu0 %v1343
        %1406 = vmatpush.bf16.msra.mxu0 %v1341
        %1407 = vmatpush.bf16.msra.mxu0 %v1339
        %1408 = vmatmul.bf16.gmra.mxu0 %v1370
        %v1409 = vpop.f32.mrf.mxu0
        %v1410 = vadd.f32 0.0, %v1409
        %v1411 = vpop.f32.mrf.mxu0
        %1412 = vdwg.mxu0
        %1413 = vmatpush.bf16.msra.mxu0 %v1369
        %1414 = vmatpush.bf16.msra.mxu0 %v1367
        %1415 = vmatpush.bf16.msra.mxu0 %v1365
        %1416 = vmatpush.bf16.msra.mxu0 %v1363
        %1417 = vmatpush.bf16.msra.mxu0 %v1361
        %1418 = vmatpush.bf16.msra.mxu0 %v1359
        %1419 = vmatpush.bf16.msra.mxu0 %v1357
        %1420 = vmatpush.bf16.msra.mxu0 %v1355
        %1421 = vmatmul.bf16.gmra.mxu0 %v1371
        %v1422 = vpop.f32.mrf.mxu0
        %v1423 = vadd.f32 %v1410, %v1422
        %v1424 = vpop.f32.mrf.mxu0
        %1425 = vdwg.mxu0
        %v1426 = vrcp.pop %v1300
        %v1427 = vrcp.pop %v1337
        %v1428 = vmul.f32 %v1397, %v1426
        %v1429 = vmul.f32 %v1423, %v1427
        %v1432 = vrot.slane %v1429, 4
        %v1433 = vsel %vm359, %v1428, %v1432
        %1435 = vst [vmem:[#allocation2] sm:$0xff] %v1433
        %v1436 = vld [vmem:[%s7] sm:$0x3]
        %v1437 = vld [vmem:[#allocation2] sm:$0xff]
        %1439 = vst [vmem:[#allocation1] ss:$2 sm:$0xff] %v1437
        %v1440 = vld.sshfl [vmem:[#allocation1] sm:$0xff pattern:$0x75316420]
        %v1441 = vld.sshfl [vmem:[#allocation1 + $0x8] sm:$0xff pattern:$0x75316420]
        %v1444 = vpack.c.bf16 %v1440, %v1440
        %v1445 = vpack.c.bf16 %v1441, %v1441
        %v1446 = vld [vmem:[%s8] sm:$0xf]
        %1448 = vset.pattern.permute.xlu0 0
        %1449 = vperm.xlu0 %1448, %v1446
        %v1450 = vpop.permute.xlu0 %1449
        %v1453 = vsel %vm421, %v1436, 0
        %v1456 = vsel %vm425, %v1444, 0
        %v1459 = vsel %vm425, %v1445, 0
        %1461 = vmatpush.bf16.msra.mxu0 0
        %1462 = vmatpush.bf16.msra.mxu0 0
        %1463 = vmatpush.bf16.msra.mxu0 0
        %1464 = vmatpush.bf16.msra.mxu0 0
        %1465 = vmatpush.bf16.msra.mxu0 0
        %1466 = vmatpush.bf16.msra.mxu0 0
        %1467 = vmatpush.bf16.msra.mxu0 0
        %1468 = vmatpush.bf16.msra.mxu0 %v1456
        %1469 = vmatmul.bf16.gmra.mxu0 %v1453
        %v1470 = vpop.f32.mrf.mxu0
        %v1471 = vadd.f32 %v1450, %v1470
        %v1472 = vpop.f32.mrf.mxu0
        %1473 = vdwg.mxu0
        %1474 = vmatpush.bf16.msra.mxu0 0
        %1475 = vmatpush.bf16.msra.mxu0 0
        %1476 = vmatpush.bf16.msra.mxu0 0
        %1477 = vmatpush.bf16.msra.mxu0 0
        %1478 = vmatpush.bf16.msra.mxu0 0
        %1479 = vmatpush.bf16.msra.mxu0 0
        %1480 = vmatpush.bf16.msra.mxu0 0
        %1481 = vmatpush.bf16.msra.mxu0 %v1459
        %1482 = vmatmul.bf16.gmra.mxu0 %v1453
        %v1483 = vpop.f32.mrf.mxu0
        %v1484 = vadd.f32 %v1450, %v1483
        %v1485 = vpop.f32.mrf.mxu0
        %1486 = vdwg.mxu0
        %v1489 = vrot.slane %v1484, 4
        %v1490 = vsel %vm359, %v1471, %v1489
        %v1492 = vadd.f32 %v352, %v1490
        %1493 = vst [vmem:[%s350] sm:$0xff] %v1492
        %s1494 = sand.u32 %s228, 1
        %s1495 = scalar_lea.sflag [#allocation5], %s1494
        %s1496 = sand.u32 %s228, 1
        %s1497 = smul.addr %s1496, 8
        %s1498 = scalar_lea.vmem [#allocation6], %s1497
        // Predicated region
        $region61: #{tpu_custom_call.1} parent=55 // pred_check
          %p1499 = pneg %p238
        $region62: #{tpu_custom_call.1} parent=55 // pred_check_branch
          %1501 = sbr.rel (%p1499) target = $region64
        $region63: #{tpu_custom_call.1} parent=55 // pred_region
          %1503 = vsyncadd %s1495, 0
          %s1504 = smul.addr %s26, 2
          %s1505 = smul.addr %s1504, 4
          %s1506 = scalar_lea.hbm %s9, %s1505
          %s1508 = sshll.u32 %s1498, 4
          %s1509 = int_to_ptr.vmem [resolvable:$true] %s1508
          %s1510 = sshll.u32 %s1506, 4
          %s1511 = int_to_ptr.hbm [resolvable:$true] %s1510
          %1513 = dma.vmem_to_hbm [thread:$0]  %s1509, 128, %s1511, %s1495
        $region64: #{tpu_custom_call.1} parent=55 // pred_fallthru
          _
      $region56: #{tpu_custom_call.1} parent=5 // pred_fallthru
        _
      %p1514 = scmp.le.s32.totalorder 2, %s21
      // Predicated region
      $region65: #{tpu_custom_call.1} parent=5 // pred_check
        %p1515 = pneg %p1514
      $region66: #{tpu_custom_call.1} parent=5 // pred_check_branch
        %1517 = sbr.rel (%p1515) target = $region68
      $region67: #{tpu_custom_call.1} parent=5 // pred_region
        %s1518 = ssub.s32 %s21, 2
        // Predicated region
        $region69: #{tpu_custom_call.1} parent=67 // pred_check
          %p1519 = pneg %p244
        $region70: #{tpu_custom_call.1} parent=67 // pred_check_branch
          %1521 = sbr.rel (%p1519) target = $region72
        $region71: #{tpu_custom_call.1} parent=67 // pred_region
          %s1522 = sand.u32 %s229, 1
          %s1523 = scalar_lea.sflag [#allocation5], %s1522
          %s1524 = sand.u32 %s229, 1
          %s1525 = smul.addr %s1524, 8
          %s1526 = scalar_lea.vmem [#allocation6], %s1525
          %1528 = dma.done %s1523, 128
        $region72: #{tpu_custom_call.1} parent=67 // pred_fallthru
          _
      $region68: #{tpu_custom_call.1} parent=5 // pred_fallthru
        _
    $region6: #{tpu_custom_call.1} parent=1 // loop_footer
      %s25 = sadd.s32 1, %s21
    $region7: #{tpu_custom_call.1} parent=1 // loop_footer_branch
      %20 = sbr.rel target = $region3
    $region8: #{tpu_custom_call.1} parent=1 // loop_exit
      _
    %1529 = vsyncpa [#allocation4], 1
    %s1530 = scalar_lea.sflag [#allocation4], 1
    %1531 = vsyncpa %s1530, 1
    %1532 = vsyncpa [#allocation5], 1
    %s1533 = scalar_lea.sflag [#allocation5], 1
    %1534 = vsyncpa %s1533, 1

</llo_original>
